<compile_context>
chip_gen: v5e
topology: v5e:2x2
jax: 0.10.0
libtpu: 0.0.40
codegen_flags: <defaults>
</compile_context>

<pallas_src>
import functools
import math

import jax
import jax.numpy as jnp
from jax import lax
from jax.experimental import pallas as pl
from jax.experimental.pallas import tpu as pltpu


# ----------------------------------------------------------------------------
# Host-side helpers (tiny, traced once per forward)
# ----------------------------------------------------------------------------
def _round_up(x, m):
    return ((x + m - 1) // m) * m


def interp_matrix(out_size, in_size):
    """1-D bilinear interpolation matrix, align_corners=True.  (out, in)."""
    if out_size == 1:
        src = jnp.zeros((1,), jnp.float32)
    else:
        src = jnp.arange(out_size, dtype=jnp.float32) * (
            (in_size - 1) / (out_size - 1))
    i0 = jnp.clip(jnp.floor(src).astype(jnp.int32), 0, in_size - 1)
    i1 = jnp.clip(i0 + 1, 0, in_size - 1)
    frac = src - i0.astype(jnp.float32)
    rows = jnp.arange(out_size)
    m = jnp.zeros((out_size, in_size), jnp.float32)
    m = m.at[rows, i0].add(1.0 - frac)
    m = m.at[rows, i1].add(frac)
    return m


def build_band_weights(w_hwio, scale, pad, wo, stride):
    """Banded (Toeplitz) per-`dh` weight matrices with BN scale folded in.

    T[dh, c*stride + (j + dw - pad), o*stride + j] = w[dh, dw, c, o] * scale[o]
    for interior output columns j in [pad, pad+wo); all other entries are zero,
    so the zero-pad lanes of the conv output stay exactly zero.
    Returns float32 of shape (k, ci*stride, co*stride).
    """
    k = w_hwio.shape[0]
    ci, co = w_hwio.shape[2], w_hwio.shape[3]
    w_sc = (w_hwio * scale).astype(jnp.float32)               # fold BN scale
    j_out = jnp.arange(wo) + pad                               # (wo,)
    cols = jnp.arange(co)[:, None] * stride + j_out[None, :]   # (co, wo)
    ts = []
    for dh in range(k):
        t = jnp.zeros((ci * stride, co * stride), jnp.float32)
        for dw in range(k):
            rows = jnp.arange(ci)[:, None] * stride + (j_out[None, :] + dw - pad)
            vals = jnp.broadcast_to(w_sc[dh, dw][:, :, None], (ci, co, wo))
            t = t.at[rows[:, None, :], cols[None, :, :]].add(vals)
        ts.append(t)
    return jnp.stack(ts, axis=0)


def _pick_b_tile(n, hp, target_rows=128):
    """Largest divisor of n with b_tile*hp near target and grid length >= 2."""
    want = max(1, target_rows // hp)
    best = 1
    for bt in range(1, n + 1):
        if n % bt or bt > want:
            continue
        if n < 2 or n // bt >= 2:     # keep >=2 grid steps for v7x's two TCs
            best = bt
    return best


# ----------------------------------------------------------------------------
# Fused kernel: upsample -> [conv + folded BN + ReLU] x L, B_tile batch elems
# ----------------------------------------------------------------------------
def _up_multi_conv_kernel(x_ref, mh_ref, mw_ref, mask_ref, *rest,
                          cin, k, pad, stride, hp, b_tile, layer_ch):
    o_ref = rest[-1]
    layer_refs = rest[:-1]
    rows = b_tile * hp

    mh = mh_ref[...]      # (rows, b_tile*H) block-diag height interp, pad rows baked in
    mw = mw_ref[...]      # (W, stride)      width interp, pad lanes zero
    mask = mask_ref[...]  # (rows, 1)        1 on interior rows, 0 on pad rows

    # ---- bilinear upsample (align_corners=True), separable, f32 -------------
    x = x_ref[...].astype(jnp.float32)        # (b_tile, cin, H, W), cast in-kernel
    h_in, w_in = x.shape[2], x.shape[3]
    cols = []
    for c in range(cin):                      # static, cin is small
        xc = x[:, c, :, :].reshape(b_tile * h_in, w_in)               # (b*H, W)
        u = jnp.dot(xc, mw, preferred_element_type=jnp.float32)       # (b*H, stride)
        cols.append(jnp.dot(mh, u, preferred_element_type=jnp.float32))  # (rows, stride)
    act = jnp.concatenate(cols, axis=1)       # (rows, cin*stride)  32-aligned pieces

    # ---- conv -> folded BN -> ReLU chain, fully VMEM resident ---------------
    for li, (ci, co) in enumerate(layer_ch):
        t_ref = layer_refs[2 * li]            # (k, ci*stride, co*stride) bf16 banded weights
        b_ref = layer_refs[2 * li + 1]        # (1, co*stride) f32 folded conv+BN bias
        acc = None
        for dh in range(k):
            sh = (pad - dh) % rows
            a_sh = act if sh == 0 else pltpu.roll(act, sh, axis=0)    # XLU sublane roll
            part = jnp.dot(a_sh.astype(jnp.bfloat16), t_ref[dh, :, :],
                           preferred_element_type=jnp.float32)
            acc = part if acc is None else acc + part
        # Interior mask re-zeroes the per-block pad rows (which the cyclic roll
        # fills with cross-block garbage) so they stay valid zero padding for
        # the next layer; bias row is zero on pad lanes for the same reason.
        act = mask * jnp.maximum(acc + b_ref[...], 0.0)               # (rows, co*stride)

    # ---- single lane-dense, sublane-aligned store ----------------------------
    o_ref[...] = act.astype(o_ref.dtype)


# ----------------------------------------------------------------------------
# Public forward (NCHW in / NCHW out, matches the PyTorch module)
# ----------------------------------------------------------------------------
@functools.partial(jax.jit, static_argnames=("upsample_size", "filter_size"))
def up_multi_conv_forward(x_nchw, layers, upsample_size, filter_size):
    n, cin, h, w = x_nchw.shape
    ho, wo = upsample_size
    k = filter_size
    assert k % 2 == 1, "odd filter_size expected (pad=(k-1)//2 keeps size)"
    pad = (k - 1) // 2

    # Channel lane stride rounded to 32 so conv K/N are multiples of 128 for
    # typical channel counts (4*32=128, 8*32=256); per-element row block Hp is
    # rounded to the 8-sublane granule (extra rows are zero padding).
    stride = _round_up(wo + 2 * pad, 32)
    hp = _round_up(ho + 2 * pad, 8)
    b_tile = _pick_b_tile(n, hp)
    rows = b_tile * hp
    grid = (n // b_tile,)

    # Separable bilinear interp matrices.  Height matrix is block-diagonal over
    # the batch tile with the +/-pad zero rows baked in; the width matrix
    # carries the conv zero-pad lanes, so padding never needs explicit zeroing.
    mh = interp_matrix(ho, h)                                   # (Ho, H)
    mw = interp_matrix(wo, w)                                   # (Wo, W)
    mh_ext = jnp.zeros((hp, h), jnp.float32).at[pad:pad + ho, :].set(mh)
    mh_blk = jnp.zeros((rows, b_tile * h), jnp.float32)
    for b in range(b_tile):
        mh_blk = mh_blk.at[b * hp:(b + 1) * hp, b * h:(b + 1) * h].set(mh_ext)
    mw_pad = jnp.zeros((w, stride), jnp.float32).at[:, pad:pad + wo].set(mw.T)

    r_loc = jnp.arange(rows) % hp
    row_mask = ((r_loc >= pad) & (r_loc < pad + ho)).astype(
        jnp.float32).reshape(rows, 1)

    inputs = [x_nchw, mh_blk, mw_pad, row_mask]
    in_specs = [
        pl.BlockSpec((b_tile, cin, h, w), lambda i: (i, 0, 0, 0)),
        pl.BlockSpec((rows, b_tile * h), lambda i: (0, 0)),
        pl.BlockSpec((w, stride), lambda i: (0, 0)),
        pl.BlockSpec((rows, 1), lambda i: (0, 0)),
    ]

    layer_ch = []
    ci = cin
    for (w_hwio, scale, bias) in layers:
        co = w_hwio.shape[-1]
        t = build_band_weights(w_hwio, scale, pad, wo, stride)  # (k, ci*S, co*S)
        brow = jnp.zeros((co, stride), jnp.float32).at[:, pad:pad + wo].set(
            bias[:, None]).reshape(1, co * stride)
        # bf16 weights -> ~2x MXU throughput on v6e/v7x; accumulation stays f32.
        inputs += [t.astype(jnp.bfloat16), brow]
        in_specs += [
            pl.BlockSpec((k, ci * stride, co * stride), lambda i: (0, 0, 0)),
            pl.BlockSpec((1, co * stride), lambda i: (0, 0)),
        ]
        layer_ch.append((ci, co))
        ci = co
    cout = layer_ch[-1][1]

    kern = functools.partial(
        _up_multi_conv_kernel, cin=cin, k=k, pad=pad, stride=stride, hp=hp,
        b_tile=b_tile, layer_ch=tuple(layer_ch))

    # TODO(synk): when scaling channels / Wo (especially on v7x with 64 MiB
    # VMEM), switch the banded weights to im2col (K = ci*k*k), single-buffer
    # the grid-constant operands (pipeline_mode=pl.Buffered(1)) and set
    # vmem_limit_bytes; unnecessary at these shapes (<1.5 MiB of weights).
    slab = pl.pallas_call(
        kern,
        out_shape=jax.ShapeDtypeStruct((n * hp, cout * stride), jnp.float32),
        grid=grid,
        in_specs=in_specs,
        out_specs=pl.BlockSpec((rows, cout * stride), lambda i: (i, 0)),
        compiler_params=pltpu.CompilerParams(
            dimension_semantics=("parallel",)),
    )(*inputs)

    # Lane-dense slab -> NCHW un-pad + transpose in plain XLA (outside kernel).
    slab = slab.reshape(n, hp, cout, stride)
    out = slab[:, pad:pad + ho, :, pad:pad + wo]                # (n, ho, cout, wo)
    return jnp.transpose(out, (0, 2, 1, 3))                     # (n, cout, ho, wo)


# ----------------------------------------------------------------------------
# Parameter init (deterministic synthetic conv + inference BatchNorm params)
# ----------------------------------------------------------------------------
def init_up_multi_conv(key, in_ch, out_ch, filter_size, conv_num):
    """Returns per-layer (w_hwio, bn_scale, folded_bias)."""
    eps = 1e-5
    layers = []
    cin = in_ch
    for _ in range(conv_num):
        key, kw_, kb_, kg_, kbe_ = jax.random.split(key, 5)
        fan_in = cin * filter_size * filter_size
        bound = 1.0 / math.sqrt(fan_in)
        w = jax.random.uniform(
            kw_, (filter_size, filter_size, cin, out_ch), jnp.float32,
            -bound, bound)
        conv_b = jax.random.uniform(kb_, (out_ch,), jnp.float32, -bound, bound)
        gamma = 1.0 + 0.1 * jax.random.normal(kg_, (out_ch,), jnp.float32)
        beta = 0.1 * jax.random.normal(kbe_, (out_ch,), jnp.float32)
        run_mean = jnp.zeros((out_ch,), jnp.float32)
        run_var = jnp.ones((out_ch,), jnp.float32)
        scale = gamma / jnp.sqrt(run_var + eps)
        bias = (conv_b - run_mean) * scale + beta
        layers.append((w, scale, bias))
        cin = out_ch
    return layers


# ----------------------------------------------------------------------------
# Pure-JAX reference (same math, no Pallas) for a correctness check
# ----------------------------------------------------------------------------
def reference_forward(x_nchw, layers, upsample_size, filter_size):
    pad = (filter_size - 1) // 2
    x = jnp.transpose(x_nchw, (0, 2, 3, 1))          # NCHW -> NHWC
    _, h, w, _ = x.shape
    ho, wo = upsample_size
    mh = interp_matrix(ho, h)
    mw = interp_matrix(wo, w)
    x = jnp.einsum("oh,nhwc->nowc", mh, x)
    x = jnp.einsum("pw,nowc->nopc", mw, x)
    for (wgt, scale, bias) in layers:
        y = lax.conv_general_dilated(
            x, wgt, window_strides=(1, 1),
            padding=[(pad, pad), (pad, pad)],
            dimension_numbers=("NHWC", "HWIO", "NHWC"))
        x = jnp.maximum(y * scale + bias, 0.0)
    return jnp.transpose(x, (0, 3, 1, 2))            # NHWC -> NCHW


if __name__ == "__main__":
    key = jax.random.PRNGKey(0)
    in_ch, out_ch, filter_size, conv_num = 4, 8, 3, 2
    upsample_size = (24, 24)

    kx, kp = jax.random.split(key)
    x = jax.random.normal(kx, (2, in_ch, 16, 16), jnp.float32)   # NCHW input
    layers = init_up_multi_conv(kp, in_ch, out_ch, filter_size, conv_num)

    out = up_multi_conv_forward(
        x, layers, upsample_size=upsample_size, filter_size=filter_size)
    out = jax.block_until_ready(out)

    ref = reference_forward(x, layers, upsample_size, filter_size)
    assert out.shape == (2, out_ch, upsample_size[0], upsample_size[1])
    # bf16 conv dots (f32 accumulation) vs the pure-f32 reference -> looser tol.
    err = float(jnp.max(jnp.abs(out - ref)))
    assert jnp.allclose(out, ref, rtol=5e-2, atol=5e-2), err
    print("KERNEL_OK")
</pallas_src>

<mosaic_0001>
module attributes {stable_mosaic.version = 11 : i64} {
  func.func @_up_multi_conv_kernel(%arg0: i32, %arg1: memref<1x4x16x16xf32, #tpu.memory_space<vmem>>, %arg2: memref<32x16xf32, #tpu.memory_space<vmem>>, %arg3: memref<16x32xf32, #tpu.memory_space<vmem>>, %arg4: memref<32x1xf32, #tpu.memory_space<vmem>>, %arg5: memref<3x128x256xbf16, #tpu.memory_space<vmem>>, %arg6: memref<1x256xf32, #tpu.memory_space<vmem>>, %arg7: memref<3x256x256xbf16, #tpu.memory_space<vmem>>, %arg8: memref<1x256xf32, #tpu.memory_space<vmem>>, %arg9: memref<32x256xf32, #tpu.memory_space<vmem>>) attributes {dimension_semantics = [#tpu.dimension_semantics<parallel>], iteration_bounds = array<i64: 2>, scalar_prefetch = 0 : i64, scratch_operands = 0 : i64, tpu.core_type = #tpu.core_type<tc>, window_params = [{transform_indices = @transform_0, window_bounds = array<i64: 1, 4, 16, 16>}, {pipeline_mode = #tpu.pipeline_mode<synchronous>, transform_indices = @transform_1, window_bounds = array<i64: 32, 16>}, {pipeline_mode = #tpu.pipeline_mode<synchronous>, transform_indices = @transform_2, window_bounds = array<i64: 16, 32>}, {pipeline_mode = #tpu.pipeline_mode<synchronous>, transform_indices = @transform_3, window_bounds = array<i64: 32, 1>}, {pipeline_mode = #tpu.pipeline_mode<synchronous>, transform_indices = @transform_4, window_bounds = array<i64: 3, 128, 256>}, {pipeline_mode = #tpu.pipeline_mode<synchronous>, transform_indices = @transform_5, window_bounds = array<i64: 1, 256>}, {pipeline_mode = #tpu.pipeline_mode<synchronous>, transform_indices = @transform_6, window_bounds = array<i64: 3, 256, 256>}, {pipeline_mode = #tpu.pipeline_mode<synchronous>, transform_indices = @transform_7, window_bounds = array<i64: 1, 256>}, {transform_indices = @transform_8, window_bounds = array<i64: 32, 256>}]} {
    %c0 = arith.constant 0 : index
    %c0_0 = arith.constant 0 : index
    %0 = vector.load %arg2[%c0, %c0_0] : memref<32x16xf32, #tpu.memory_space<vmem>>, vector<32x16xf32>
    %c0_1 = arith.constant 0 : index
    %c0_2 = arith.constant 0 : index
    %1 = vector.load %arg3[%c0_1, %c0_2] : memref<16x32xf32, #tpu.memory_space<vmem>>, vector<16x32xf32>
    %c0_3 = arith.constant 0 : index
    %c0_4 = arith.constant 0 : index
    %2 = vector.load %arg4[%c0_3, %c0_4] : memref<32x1xf32, #tpu.memory_space<vmem>>, vector<32x1xf32>
    %c0_5 = arith.constant 0 : index
    %c0_6 = arith.constant 0 : index
    %c0_7 = arith.constant 0 : index
    %c0_8 = arith.constant 0 : index
    %3 = vector.load %arg1[%c0_5, %c0_6, %c0_7, %c0_8] : memref<1x4x16x16xf32, #tpu.memory_space<vmem>>, vector<1x4x16x16xf32>
    %4 = vector.extract_strided_slice %3 {offsets = [0, 0, 0, 0], sizes = [1, 1, 16, 16], strides = [1, 1, 1, 1]} : vector<1x4x16x16xf32> to vector<1x1x16x16xf32>
    %5 = vector.shape_cast %4 : vector<1x1x16x16xf32> to vector<1x16x16xf32>
    %6 = vector.shape_cast %5 : vector<1x16x16xf32> to vector<16x16xf32>
    %cst = arith.constant dense<0.000000e+00> : vector<16x32xf32>
    %7 = tpu.matmul %6, %1, %cst {dimension_numbers = #tpu.dot_dimension_numbers<[1], [0], [0], [1], [0, 0, 1, 1], [], []>} : vector<16x16xf32>, vector<16x32xf32>, vector<16x32xf32> -> vector<16x32xf32>
    %cst_9 = arith.constant dense<0.000000e+00> : vector<32x32xf32>
    %8 = tpu.matmul %0, %7, %cst_9 {dimension_numbers = #tpu.dot_dimension_numbers<[1], [0], [0], [1], [0, 0, 1, 1], [], []>} : vector<32x16xf32>, vector<16x32xf32>, vector<32x32xf32> -> vector<32x32xf32>
    %9 = vector.extract_strided_slice %3 {offsets = [0, 1, 0, 0], sizes = [1, 1, 16, 16], strides = [1, 1, 1, 1]} : vector<1x4x16x16xf32> to vector<1x1x16x16xf32>
    %10 = vector.shape_cast %9 : vector<1x1x16x16xf32> to vector<1x16x16xf32>
    %11 = vector.shape_cast %10 : vector<1x16x16xf32> to vector<16x16xf32>
    %cst_10 = arith.constant dense<0.000000e+00> : vector<16x32xf32>
    %12 = tpu.matmul %11, %1, %cst_10 {dimension_numbers = #tpu.dot_dimension_numbers<[1], [0], [0], [1], [0, 0, 1, 1], [], []>} : vector<16x16xf32>, vector<16x32xf32>, vector<16x32xf32> -> vector<16x32xf32>
    %cst_11 = arith.constant dense<0.000000e+00> : vector<32x32xf32>
    %13 = tpu.matmul %0, %12, %cst_11 {dimension_numbers = #tpu.dot_dimension_numbers<[1], [0], [0], [1], [0, 0, 1, 1], [], []>} : vector<32x16xf32>, vector<16x32xf32>, vector<32x32xf32> -> vector<32x32xf32>
    %14 = vector.extract_strided_slice %3 {offsets = [0, 2, 0, 0], sizes = [1, 1, 16, 16], strides = [1, 1, 1, 1]} : vector<1x4x16x16xf32> to vector<1x1x16x16xf32>
    %15 = vector.shape_cast %14 : vector<1x1x16x16xf32> to vector<1x16x16xf32>
    %16 = vector.shape_cast %15 : vector<1x16x16xf32> to vector<16x16xf32>
    %cst_12 = arith.constant dense<0.000000e+00> : vector<16x32xf32>
    %17 = tpu.matmul %16, %1, %cst_12 {dimension_numbers = #tpu.dot_dimension_numbers<[1], [0], [0], [1], [0, 0, 1, 1], [], []>} : vector<16x16xf32>, vector<16x32xf32>, vector<16x32xf32> -> vector<16x32xf32>
    %cst_13 = arith.constant dense<0.000000e+00> : vector<32x32xf32>
    %18 = tpu.matmul %0, %17, %cst_13 {dimension_numbers = #tpu.dot_dimension_numbers<[1], [0], [0], [1], [0, 0, 1, 1], [], []>} : vector<32x16xf32>, vector<16x32xf32>, vector<32x32xf32> -> vector<32x32xf32>
    %19 = vector.extract_strided_slice %3 {offsets = [0, 3, 0, 0], sizes = [1, 1, 16, 16], strides = [1, 1, 1, 1]} : vector<1x4x16x16xf32> to vector<1x1x16x16xf32>
    %20 = vector.shape_cast %19 : vector<1x1x16x16xf32> to vector<1x16x16xf32>
    %21 = vector.shape_cast %20 : vector<1x16x16xf32> to vector<16x16xf32>
    %cst_14 = arith.constant dense<0.000000e+00> : vector<16x32xf32>
    %22 = tpu.matmul %21, %1, %cst_14 {dimension_numbers = #tpu.dot_dimension_numbers<[1], [0], [0], [1], [0, 0, 1, 1], [], []>} : vector<16x16xf32>, vector<16x32xf32>, vector<16x32xf32> -> vector<16x32xf32>
    %cst_15 = arith.constant dense<0.000000e+00> : vector<32x32xf32>
    %23 = tpu.matmul %0, %22, %cst_15 {dimension_numbers = #tpu.dot_dimension_numbers<[1], [0], [0], [1], [0, 0, 1, 1], [], []>} : vector<32x16xf32>, vector<16x32xf32>, vector<32x32xf32> -> vector<32x32xf32>
    %24 = tpu.concatenate %8, %13, %18, %23 in 1 : vector<32x32xf32>, vector<32x32xf32>, vector<32x32xf32>, vector<32x32xf32> -> vector<32x128xf32>
    %c1_i32 = arith.constant 1 : i32
    %25 = tpu.dynamic_rotate %24 by %c1_i32 dim 0 : vector<32x128xf32>, i32 -> vector<32x128xf32>
    %26 = arith.truncf %25 : vector<32x128xf32> to vector<32x128xbf16>
    %c0_16 = arith.constant 0 : index
    %c0_17 = arith.constant 0 : index
    %c0_18 = arith.constant 0 : index
    %27 = vector.load %arg5[%c0_16, %c0_17, %c0_18] : memref<3x128x256xbf16, #tpu.memory_space<vmem>>, vector<1x128x256xbf16>
    %28 = vector.shape_cast %27 : vector<1x128x256xbf16> to vector<128x256xbf16>
    %cst_19 = arith.constant dense<0.000000e+00> : vector<32x256xf32>
    %29 = tpu.matmul %26, %28, %cst_19 {dimension_numbers = #tpu.dot_dimension_numbers<[1], [0], [0], [1], [0, 0, 1, 1], [], []>} : vector<32x128xbf16>, vector<128x256xbf16>, vector<32x256xf32> -> vector<32x256xf32>
    %30 = arith.truncf %24 : vector<32x128xf32> to vector<32x128xbf16>
    %c1 = arith.constant 1 : index
    %c0_20 = arith.constant 0 : index
    %c0_21 = arith.constant 0 : index
    %31 = vector.load %arg5[%c1, %c0_20, %c0_21] : memref<3x128x256xbf16, #tpu.memory_space<vmem>>, vector<1x128x256xbf16>
    %32 = vector.shape_cast %31 : vector<1x128x256xbf16> to vector<128x256xbf16>
    %cst_22 = arith.constant dense<0.000000e+00> : vector<32x256xf32>
    %33 = tpu.matmul %30, %32, %cst_22 {dimension_numbers = #tpu.dot_dimension_numbers<[1], [0], [0], [1], [0, 0, 1, 1], [], []>} : vector<32x128xbf16>, vector<128x256xbf16>, vector<32x256xf32> -> vector<32x256xf32>
    %34 = arith.addf %29, %33 : vector<32x256xf32>
    %c31_i32 = arith.constant 31 : i32
    %35 = tpu.dynamic_rotate %24 by %c31_i32 dim 0 : vector<32x128xf32>, i32 -> vector<32x128xf32>
    %36 = arith.truncf %35 : vector<32x128xf32> to vector<32x128xbf16>
    %c2 = arith.constant 2 : index
    %c0_23 = arith.constant 0 : index
    %c0_24 = arith.constant 0 : index
    %37 = vector.load %arg5[%c2, %c0_23, %c0_24] : memref<3x128x256xbf16, #tpu.memory_space<vmem>>, vector<1x128x256xbf16>
    %38 = vector.shape_cast %37 : vector<1x128x256xbf16> to vector<128x256xbf16>
    %cst_25 = arith.constant dense<0.000000e+00> : vector<32x256xf32>
    %39 = tpu.matmul %36, %38, %cst_25 {dimension_numbers = #tpu.dot_dimension_numbers<[1], [0], [0], [1], [0, 0, 1, 1], [], []>} : vector<32x128xbf16>, vector<128x256xbf16>, vector<32x256xf32> -> vector<32x256xf32>
    %40 = arith.addf %34, %39 : vector<32x256xf32>
    %c0_26 = arith.constant 0 : index
    %c0_27 = arith.constant 0 : index
    %41 = vector.load %arg6[%c0_26, %c0_27] : memref<1x256xf32, #tpu.memory_space<vmem>>, vector<1x256xf32>
    %42 = vector.broadcast %41 : vector<1x256xf32> to vector<32x256xf32>
    %43 = arith.addf %40, %42 : vector<32x256xf32>
    %cst_28 = arith.constant 0.000000e+00 : f32
    %44 = vector.broadcast %cst_28 : f32 to vector<32x256xf32>
    %45 = arith.maximumf %43, %44 : vector<32x256xf32>
    %46 = vector.broadcast %2 : vector<32x1xf32> to vector<32x256xf32>
    %47 = arith.mulf %46, %45 : vector<32x256xf32>
    %c1_i32_29 = arith.constant 1 : i32
    %48 = tpu.dynamic_rotate %47 by %c1_i32_29 dim 0 : vector<32x256xf32>, i32 -> vector<32x256xf32>
    %49 = arith.truncf %48 : vector<32x256xf32> to vector<32x256xbf16>
    %c0_30 = arith.constant 0 : index
    %c0_31 = arith.constant 0 : index
    %c0_32 = arith.constant 0 : index
    %50 = vector.load %arg7[%c0_30, %c0_31, %c0_32] : memref<3x256x256xbf16, #tpu.memory_space<vmem>>, vector<1x256x256xbf16>
    %51 = vector.shape_cast %50 : vector<1x256x256xbf16> to vector<256x256xbf16>
    %cst_33 = arith.constant dense<0.000000e+00> : vector<32x256xf32>
    %52 = tpu.matmul %49, %51, %cst_33 {dimension_numbers = #tpu.dot_dimension_numbers<[1], [0], [0], [1], [0, 0, 1, 1], [], []>} : vector<32x256xbf16>, vector<256x256xbf16>, vector<32x256xf32> -> vector<32x256xf32>
    %53 = arith.truncf %47 : vector<32x256xf32> to vector<32x256xbf16>
    %c1_34 = arith.constant 1 : index
    %c0_35 = arith.constant 0 : index
    %c0_36 = arith.constant 0 : index
    %54 = vector.load %arg7[%c1_34, %c0_35, %c0_36] : memref<3x256x256xbf16, #tpu.memory_space<vmem>>, vector<1x256x256xbf16>
    %55 = vector.shape_cast %54 : vector<1x256x256xbf16> to vector<256x256xbf16>
    %cst_37 = arith.constant dense<0.000000e+00> : vector<32x256xf32>
    %56 = tpu.matmul %53, %55, %cst_37 {dimension_numbers = #tpu.dot_dimension_numbers<[1], [0], [0], [1], [0, 0, 1, 1], [], []>} : vector<32x256xbf16>, vector<256x256xbf16>, vector<32x256xf32> -> vector<32x256xf32>
    %57 = arith.addf %52, %56 : vector<32x256xf32>
    %c31_i32_38 = arith.constant 31 : i32
    %58 = tpu.dynamic_rotate %47 by %c31_i32_38 dim 0 : vector<32x256xf32>, i32 -> vector<32x256xf32>
    %59 = arith.truncf %58 : vector<32x256xf32> to vector<32x256xbf16>
    %c2_39 = arith.constant 2 : index
    %c0_40 = arith.constant 0 : index
    %c0_41 = arith.constant 0 : index
    %60 = vector.load %arg7[%c2_39, %c0_40, %c0_41] : memref<3x256x256xbf16, #tpu.memory_space<vmem>>, vector<1x256x256xbf16>
    %61 = vector.shape_cast %60 : vector<1x256x256xbf16> to vector<256x256xbf16>
    %cst_42 = arith.constant dense<0.000000e+00> : vector<32x256xf32>
    %62 = tpu.matmul %59, %61, %cst_42 {dimension_numbers = #tpu.dot_dimension_numbers<[1], [0], [0], [1], [0, 0, 1, 1], [], []>} : vector<32x256xbf16>, vector<256x256xbf16>, vector<32x256xf32> -> vector<32x256xf32>
    %63 = arith.addf %57, %62 : vector<32x256xf32>
    %c0_43 = arith.constant 0 : index
    %c0_44 = arith.constant 0 : index
    %64 = vector.load %arg8[%c0_43, %c0_44] : memref<1x256xf32, #tpu.memory_space<vmem>>, vector<1x256xf32>
    %65 = vector.broadcast %64 : vector<1x256xf32> to vector<32x256xf32>
    %66 = arith.addf %63, %65 : vector<32x256xf32>
    %cst_45 = arith.constant 0.000000e+00 : f32
    %67 = vector.broadcast %cst_45 : f32 to vector<32x256xf32>
    %68 = arith.maximumf %66, %67 : vector<32x256xf32>
    %69 = vector.broadcast %2 : vector<32x1xf32> to vector<32x256xf32>
    %70 = arith.mulf %69, %68 : vector<32x256xf32>
    %c0_46 = arith.constant 0 : index
    %c0_47 = arith.constant 0 : index
    %71 = vector.load %arg9[%c0_46, %c0_47] : memref<32x256xf32, #tpu.memory_space<vmem>>, vector<32x256xf32>
    tpu.vector_store %arg9[%c0_46, %c0_47], %70 {strides = array<i32>} : memref<32x256xf32, #tpu.memory_space<vmem>>, vector<32x256xf32>,
    return
  }
  func.func @transform_0(%arg0: i32) -> (i32, i32, i32, i32) {
    %c0_i32 = arith.constant 0 : i32
    %c0_i32_0 = arith.constant 0 : i32
    %c0_i32_1 = arith.constant 0 : i32
    %c0_i32_2 = arith.constant 0 : i32
    return %arg0, %c0_i32, %c0_i32_0, %c0_i32_1 : i32, i32, i32, i32
  }
  func.func @transform_1(%arg0: i32) -> (i32, i32) {
    %c0_i32 = arith.constant 0 : i32
    %c0_i32_0 = arith.constant 0 : i32
    %c0_i32_1 = arith.constant 0 : i32
    return %c0_i32, %c0_i32_0 : i32, i32
  }
  func.func @transform_2(%arg0: i32) -> (i32, i32) {
    %c0_i32 = arith.constant 0 : i32
    %c0_i32_0 = arith.constant 0 : i32
    %c0_i32_1 = arith.constant 0 : i32
    return %c0_i32, %c0_i32_0 : i32, i32
  }
  func.func @transform_3(%arg0: i32) -> (i32, i32) {
    %c0_i32 = arith.constant 0 : i32
    %c0_i32_0 = arith.constant 0 : i32
    %c0_i32_1 = arith.constant 0 : i32
    return %c0_i32, %c0_i32_0 : i32, i32
  }
  func.func @transform_4(%arg0: i32) -> (i32, i32, i32) {
    %c0_i32 = arith.constant 0 : i32
    %c0_i32_0 = arith.constant 0 : i32
    %c0_i32_1 = arith.constant 0 : i32
    %c0_i32_2 = arith.constant 0 : i32
    return %c0_i32, %c0_i32_0, %c0_i32_1 : i32, i32, i32
  }
  func.func @transform_5(%arg0: i32) -> (i32, i32) {
    %c0_i32 = arith.constant 0 : i32
    %c0_i32_0 = arith.constant 0 : i32
    %c0_i32_1 = arith.constant 0 : i32
    return %c0_i32, %c0_i32_0 : i32, i32
  }
  func.func @transform_6(%arg0: i32) -> (i32, i32, i32) {
    %c0_i32 = arith.constant 0 : i32
    %c0_i32_0 = arith.constant 0 : i32
    %c0_i32_1 = arith.constant 0 : i32
    %c0_i32_2 = arith.constant 0 : i32
    return %c0_i32, %c0_i32_0, %c0_i32_1 : i32, i32, i32
  }
  func.func @transform_7(%arg0: i32) -> (i32, i32) {
    %c0_i32 = arith.constant 0 : i32
    %c0_i32_0 = arith.constant 0 : i32
    %c0_i32_1 = arith.constant 0 : i32
    return %c0_i32, %c0_i32_0 : i32, i32
  }
  func.func @transform_8(%arg0: i32) -> (i32, i32) {
    %c0_i32 = arith.constant 0 : i32
    %c0_i32_0 = arith.constant 0 : i32
    return %arg0, %c0_i32 : i32, i32
  }
}

</mosaic_0001>

<llo_original>
// kernel: up_multi_conv_forward.1
$region0: #{up_multi_conv_forward.1}
  #allocation0 [shape = 'u32[]', space=smem, size = 0x4, offset = 0x4, fixed_abs, tag = 'smem constant byte address 0x4 - core index']
  #allocation1 [shape = 'u32[72,128]{1,0:T(1,128)}', space=vmem, size = 0x9000, scoped, tag = 'internal scratch']
  %s0 = inlined_call_operand.vmem [shape: f32[2,4,16,16], index: 0, kind: input, shape index: {}]
  %s1 = inlined_call_operand.vmem [shape: f32[32,16], index: 1, kind: input, shape index: {}]
  %s2 = inlined_call_operand.vmem [shape: f32[16,32], index: 2, kind: input, shape index: {}]
  %s3 = inlined_call_operand.vmem [shape: f32[32,1], index: 3, kind: input, shape index: {}]
  %s4 = inlined_call_operand.vmem [shape: bf16[3,128,256], index: 4, kind: input, shape index: {}]
  %s5 = inlined_call_operand.vmem [shape: f32[1,256], index: 5, kind: input, shape index: {}]
  %s6 = inlined_call_operand.vmem [shape: bf16[3,256,256], index: 6, kind: input, shape index: {}]
  %s7 = inlined_call_operand.vmem [shape: f32[1,256], index: 7, kind: input, shape index: {}]
  %s8 = inlined_call_operand.vmem [shape: f32[64,256], index: 8, kind: output, shape index: {}]
  %s9 = sld [smem:[#allocation0]]
  $region65: #{up_multi_conv_forward.1} parent=0
    _
  %s11 = ssub.s32 1, %s9
  %s12 = scalar_select 0, %s11, %s9
  loop: start=0, step=1, limit=4
  $region2: #{up_multi_conv_forward.1} parent=0 // loop_pre_header
    _
  $region3: #{up_multi_conv_forward.1} parent=0 // loop_header
    %s14 = sphi 0, %s18
    %p15 = scmp.ge.s32.totalorder %s14, 4
    %s24 = sphi 0, %s26
    %s27 = sphi 0, %s24
    %s28 = sphi 0, %s27
    %s44 = sphi 0, %s28
    %s48 = sphi 0, %s48
    %s50 = sphi 0, %s48
    %s51 = sphi 0, %s50
    %s65 = sphi 0, %s51
    %s69 = sphi 0, %s69
    %s71 = sphi 0, %s69
    %s72 = sphi 0, %s71
    %s86 = sphi 0, %s72
    %s90 = sphi 0, %s90
    %s92 = sphi 0, %s90
    %s93 = sphi 0, %s92
    %s107 = sphi 0, %s93
    %s111 = sphi 0, %s111
    %s113 = sphi 0, %s111
    %s114 = sphi 0, %s113
    %s128 = sphi 0, %s114
    %s132 = sphi 0, %s132
    %s134 = sphi 0, %s132
    %s135 = sphi 0, %s134
    %s149 = sphi 0, %s135
    %s153 = sphi 0, %s153
    %s155 = sphi 0, %s153
    %s156 = sphi 0, %s155
    %s170 = sphi 0, %s156
    %s174 = sphi 0, %s174
    %s176 = sphi 0, %s174
    %s177 = sphi 0, %s176
    %s191 = sphi 0, %s177
    %s197 = sphi 0, %s199
    %s200 = sphi 0, %s197
    %s201 = sphi 0, %s200
    %s217 = sphi 0, %s201
  $region4: #{up_multi_conv_forward.1} parent=0 // loop_header_branch
    %17 = sbr.rel (%p15) target = $region8
  $region5: #{up_multi_conv_forward.1} parent=0 // loop_body
    %s19 = ssub.s32 %s14, 1
    %s20 = ssub.s32 %s14, 2
    %s21 = sadd.s32 %s14, 1
    %s22 = ssub.s32 %s14, %s21
    %p23 = scmp.eq.s32.totalorder %s22, 0
    %s25 = sadd.s32 %s24, 1
    %s26 = scalar_select %p23, %s24, %s25
    %p29 = pneg %p23
    %p30 = scmp.eq.s32.totalorder %s14, 1
    %p31 = por %p29, %p30
    %p32 = scmp.ne.s32.totalorder %s24, %s27
    %p33 = scmp.eq.s32.totalorder %s14, 0
    %p34 = por %p32, %p33
    %p35 = scmp.ne.s32.totalorder %s24, %s27
    %p36 = scmp.eq.s32.totalorder %s19, 1
    %p37 = por %p35, %p36
    %p38 = scmp.ne.s32.totalorder %s27, %s28
    %p39 = scmp.eq.s32.totalorder %s19, 0
    %p40 = por %p38, %p39
    %p41 = scmp.ne.s32.totalorder %s27, %s28
    %p42 = scmp.eq.s32.totalorder %s20, 1
    %p43 = por %p41, %p42
    %p45 = scmp.ne.s32.totalorder %s28, %s44
    %p46 = scmp.eq.s32.totalorder %s20, 0
    %p47 = por %p45, %p46
    %s49 = sadd.s32 %s48, 1
    %p52 = scmp.eq.s32.totalorder %s14, 1
    %p53 = scmp.ne.s32.totalorder %s48, %s50
    %p54 = scmp.eq.s32.totalorder %s14, 0
    %p55 = por %p53, %p54
    %p56 = scmp.ne.s32.totalorder %s48, %s50
    %p57 = scmp.eq.s32.totalorder %s19, 1
    %p58 = por %p56, %p57
    %p59 = scmp.ne.s32.totalorder %s50, %s51
    %p60 = scmp.eq.s32.totalorder %s19, 0
    %p61 = por %p59, %p60
    %p62 = scmp.ne.s32.totalorder %s50, %s51
    %p63 = scmp.eq.s32.totalorder %s20, 1
    %p64 = por %p62, %p63
    %p66 = scmp.ne.s32.totalorder %s51, %s65
    %p67 = scmp.eq.s32.totalorder %s20, 0
    %p68 = por %p66, %p67
    %s70 = sadd.s32 %s69, 1
    %p73 = scmp.eq.s32.totalorder %s14, 1
    %p74 = scmp.ne.s32.totalorder %s69, %s71
    %p75 = scmp.eq.s32.totalorder %s14, 0
    %p76 = por %p74, %p75
    %p77 = scmp.ne.s32.totalorder %s69, %s71
    %p78 = scmp.eq.s32.totalorder %s19, 1
    %p79 = por %p77, %p78
    %p80 = scmp.ne.s32.totalorder %s71, %s72
    %p81 = scmp.eq.s32.totalorder %s19, 0
    %p82 = por %p80, %p81
    %p83 = scmp.ne.s32.totalorder %s71, %s72
    %p84 = scmp.eq.s32.totalorder %s20, 1
    %p85 = por %p83, %p84
    %p87 = scmp.ne.s32.totalorder %s72, %s86
    %p88 = scmp.eq.s32.totalorder %s20, 0
    %p89 = por %p87, %p88
    %s91 = sadd.s32 %s90, 1
    %p94 = scmp.eq.s32.totalorder %s14, 1
    %p95 = scmp.ne.s32.totalorder %s90, %s92
    %p96 = scmp.eq.s32.totalorder %s14, 0
    %p97 = por %p95, %p96
    %p98 = scmp.ne.s32.totalorder %s90, %s92
    %p99 = scmp.eq.s32.totalorder %s19, 1
    %p100 = por %p98, %p99
    %p101 = scmp.ne.s32.totalorder %s92, %s93
    %p102 = scmp.eq.s32.totalorder %s19, 0
    %p103 = por %p101, %p102
    %p104 = scmp.ne.s32.totalorder %s92, %s93
    %p105 = scmp.eq.s32.totalorder %s20, 1
    %p106 = por %p104, %p105
    %p108 = scmp.ne.s32.totalorder %s93, %s107
    %p109 = scmp.eq.s32.totalorder %s20, 0
    %p110 = por %p108, %p109
    %s112 = sadd.s32 %s111, 1
    %p115 = scmp.eq.s32.totalorder %s14, 1
    %p116 = scmp.ne.s32.totalorder %s111, %s113
    %p117 = scmp.eq.s32.totalorder %s14, 0
    %p118 = por %p116, %p117
    %p119 = scmp.ne.s32.totalorder %s111, %s113
    %p120 = scmp.eq.s32.totalorder %s19, 1
    %p121 = por %p119, %p120
    %p122 = scmp.ne.s32.totalorder %s113, %s114
    %p123 = scmp.eq.s32.totalorder %s19, 0
    %p124 = por %p122, %p123
    %p125 = scmp.ne.s32.totalorder %s113, %s114
    %p126 = scmp.eq.s32.totalorder %s20, 1
    %p127 = por %p125, %p126
    %p129 = scmp.ne.s32.totalorder %s114, %s128
    %p130 = scmp.eq.s32.totalorder %s20, 0
    %p131 = por %p129, %p130
    %s133 = sadd.s32 %s132, 1
    %p136 = scmp.eq.s32.totalorder %s14, 1
    %p137 = scmp.ne.s32.totalorder %s132, %s134
    %p138 = scmp.eq.s32.totalorder %s14, 0
    %p139 = por %p137, %p138
    %p140 = scmp.ne.s32.totalorder %s132, %s134
    %p141 = scmp.eq.s32.totalorder %s19, 1
    %p142 = por %p140, %p141
    %p143 = scmp.ne.s32.totalorder %s134, %s135
    %p144 = scmp.eq.s32.totalorder %s19, 0
    %p145 = por %p143, %p144
    %p146 = scmp.ne.s32.totalorder %s134, %s135
    %p147 = scmp.eq.s32.totalorder %s20, 1
    %p148 = por %p146, %p147
    %p150 = scmp.ne.s32.totalorder %s135, %s149
    %p151 = scmp.eq.s32.totalorder %s20, 0
    %p152 = por %p150, %p151
    %s154 = sadd.s32 %s153, 1
    %p157 = scmp.eq.s32.totalorder %s14, 1
    %p158 = scmp.ne.s32.totalorder %s153, %s155
    %p159 = scmp.eq.s32.totalorder %s14, 0
    %p160 = por %p158, %p159
    %p161 = scmp.ne.s32.totalorder %s153, %s155
    %p162 = scmp.eq.s32.totalorder %s19, 1
    %p163 = por %p161, %p162
    %p164 = scmp.ne.s32.totalorder %s155, %s156
    %p165 = scmp.eq.s32.totalorder %s19, 0
    %p166 = por %p164, %p165
    %p167 = scmp.ne.s32.totalorder %s155, %s156
    %p168 = scmp.eq.s32.totalorder %s20, 1
    %p169 = por %p167, %p168
    %p171 = scmp.ne.s32.totalorder %s156, %s170
    %p172 = scmp.eq.s32.totalorder %s20, 0
    %p173 = por %p171, %p172
    %s175 = sadd.s32 %s174, 1
    %p178 = scmp.eq.s32.totalorder %s14, 1
    %p179 = scmp.ne.s32.totalorder %s174, %s176
    %p180 = scmp.eq.s32.totalorder %s14, 0
    %p181 = por %p179, %p180
    %p182 = scmp.ne.s32.totalorder %s174, %s176
    %p183 = scmp.eq.s32.totalorder %s19, 1
    %p184 = por %p182, %p183
    %p185 = scmp.ne.s32.totalorder %s176, %s177
    %p186 = scmp.eq.s32.totalorder %s19, 0
    %p187 = por %p185, %p186
    %p188 = scmp.ne.s32.totalorder %s176, %s177
    %p189 = scmp.eq.s32.totalorder %s20, 1
    %p190 = por %p188, %p189
    %p192 = scmp.ne.s32.totalorder %s177, %s191
    %p193 = scmp.eq.s32.totalorder %s20, 0
    %p194 = por %p192, %p193
    %s195 = ssub.s32 %s14, %s21
    %p196 = scmp.eq.s32.totalorder %s195, 0
    %s198 = sadd.s32 %s197, 1
    %s199 = scalar_select %p196, %s197, %s198
    %p202 = pneg %p196
    %p203 = scmp.eq.s32.totalorder %s14, 1
    %p204 = por %p202, %p203
    %p205 = scmp.ne.s32.totalorder %s197, %s200
    %p206 = scmp.eq.s32.totalorder %s14, 0
    %p207 = por %p205, %p206
    %p208 = scmp.ne.s32.totalorder %s197, %s200
    %p209 = scmp.eq.s32.totalorder %s19, 1
    %p210 = por %p208, %p209
    %p211 = scmp.ne.s32.totalorder %s200, %s201
    %p212 = scmp.eq.s32.totalorder %s19, 0
    %p213 = por %p211, %p212
    %p214 = scmp.ne.s32.totalorder %s200, %s201
    %p215 = scmp.eq.s32.totalorder %s20, 1
    %p216 = por %p214, %p215
    %p218 = scmp.ne.s32.totalorder %s201, %s217
    %p219 = scmp.eq.s32.totalorder %s20, 0
    %p220 = por %p218, %p219
    %p221 = scmp.le.s32.totalorder 1, %s14
    %p222 = scmp.lt.s32.totalorder %s14, 3
    %p223 = pnand %p221, %p222
    %p224 = pneg %p223
    // Predicated region
    $region9: #{up_multi_conv_forward.1} parent=5 // pred_check
      _
    $region10: #{up_multi_conv_forward.1} parent=5 // pred_check_branch
      %226 = sbr.rel (%p223) target = $region12
    $region11: #{up_multi_conv_forward.1} parent=5 // pred_region
      %s227 = ssub.s32 %s14, 1
      // Predicated region
      $region13: #{up_multi_conv_forward.1} parent=11 // pred_check
        %p228 = pneg %p61
      $region14: #{up_multi_conv_forward.1} parent=11 // pred_check_branch
        %230 = sbr.rel (%p228) target = $region16
      $region15: #{up_multi_conv_forward.1} parent=11 // pred_region
        _
      $region16: #{up_multi_conv_forward.1} parent=11 // pred_fallthru
        _
      // Predicated region
      $region17: #{up_multi_conv_forward.1} parent=11 // pred_check
        %p231 = pneg %p82
      $region18: #{up_multi_conv_forward.1} parent=11 // pred_check_branch
        %233 = sbr.rel (%p231) target = $region20
      $region19: #{up_multi_conv_forward.1} parent=11 // pred_region
        _
      $region20: #{up_multi_conv_forward.1} parent=11 // pred_fallthru
        _
      // Predicated region
      $region21: #{up_multi_conv_forward.1} parent=11 // pred_check
        %p234 = pneg %p103
      $region22: #{up_multi_conv_forward.1} parent=11 // pred_check_branch
        %236 = sbr.rel (%p234) target = $region24
      $region23: #{up_multi_conv_forward.1} parent=11 // pred_region
        _
      $region24: #{up_multi_conv_forward.1} parent=11 // pred_fallthru
        _
      // Predicated region
      $region25: #{up_multi_conv_forward.1} parent=11 // pred_check
        %p237 = pneg %p124
      $region26: #{up_multi_conv_forward.1} parent=11 // pred_check_branch
        %239 = sbr.rel (%p237) target = $region28
      $region27: #{up_multi_conv_forward.1} parent=11 // pred_region
        _
      $region28: #{up_multi_conv_forward.1} parent=11 // pred_fallthru
        _
      // Predicated region
      $region29: #{up_multi_conv_forward.1} parent=11 // pred_check
        %p240 = pneg %p145
      $region30: #{up_multi_conv_forward.1} parent=11 // pred_check_branch
        %242 = sbr.rel (%p240) target = $region32
      $region31: #{up_multi_conv_forward.1} parent=11 // pred_region
        _
      $region32: #{up_multi_conv_forward.1} parent=11 // pred_fallthru
        _
      // Predicated region
      $region33: #{up_multi_conv_forward.1} parent=11 // pred_check
        %p243 = pneg %p166
      $region34: #{up_multi_conv_forward.1} parent=11 // pred_check_branch
        %245 = sbr.rel (%p243) target = $region36
      $region35: #{up_multi_conv_forward.1} parent=11 // pred_region
        _
      $region36: #{up_multi_conv_forward.1} parent=11 // pred_fallthru
        _
      // Predicated region
      $region37: #{up_multi_conv_forward.1} parent=11 // pred_check
        %p246 = pneg %p187
      $region38: #{up_multi_conv_forward.1} parent=11 // pred_check_branch
        %248 = sbr.rel (%p246) target = $region40
      $region39: #{up_multi_conv_forward.1} parent=11 // pred_region
        _
      $region40: #{up_multi_conv_forward.1} parent=11 // pred_fallthru
        _
    $region12: #{up_multi_conv_forward.1} parent=5 // pred_fallthru
      _
    %p249 = scmp.lt.s32.totalorder %s14, 2
    // Predicated region
    $region41: #{up_multi_conv_forward.1} parent=5 // pred_check
      %p250 = pneg %p249
    $region42: #{up_multi_conv_forward.1} parent=5 // pred_check_branch
      %252 = sbr.rel (%p250) target = $region44
    $region43: #{up_multi_conv_forward.1} parent=5 // pred_region
      // Predicated region
      $region45: #{up_multi_conv_forward.1} parent=43 // pred_check
        %p253 = pneg %p34
      $region46: #{up_multi_conv_forward.1} parent=43 // pred_check_branch
        %255 = sbr.rel (%p253) target = $region48
      $region47: #{up_multi_conv_forward.1} parent=43 // pred_region
        %p256 = scmp.lt.s32.totalorder %s14, 1
        %s257 = scalar_select %p256, %s14, 1
        %s258 = smul.addr %s257, 8
        %s259 = smul.addr %s258, 8
        %s260 = scalar_lea.vmem %s0, %s259
      $region48: #{up_multi_conv_forward.1} parent=43 // pred_fallthru
        _
    $region44: #{up_multi_conv_forward.1} parent=5 // pred_fallthru
      _
    %p261 = scmp.le.s32.totalorder 1, %s14
    %p262 = scmp.lt.s32.totalorder %s14, 3
    %p263 = pnand %p261, %p262
    %p264 = pneg %p263
    // Predicated region
    $region49: #{up_multi_conv_forward.1} parent=5 // pred_check
      _
    $region50: #{up_multi_conv_forward.1} parent=5 // pred_check_branch
      %266 = sbr.rel (%p263) target = $region52
    $region51: #{up_multi_conv_forward.1} parent=5 // pred_region
      %s267 = ssub.s32 %s14, 1
      %p268 = scmp.lt.s32.totalorder %s19, 1
      %s269 = scalar_select %p268, %s19, 1
      %s270 = smul.addr %s269, 8
      %s271 = smul.addr %s270, 8
      %s272 = scalar_lea.vmem %s0, %s271
      %p273 = pneg %p40
      %p274 = pneg %p37
      %p275 = pneg %p61
      %p276 = pneg %p58
      %p277 = pneg %p82
      %p278 = pneg %p79
      %p279 = pneg %p103
      %p280 = pneg %p100
      %p281 = pneg %p124
      %p282 = pneg %p121
      %p283 = pneg %p145
      %p284 = pneg %p142
      %p285 = pneg %p166
      %p286 = pneg %p163
      %p287 = pneg %p187
      %p288 = pneg %p184
      %p289 = pneg %p213
      %p290 = pneg %p210
      %s291 = smul.u32 4, %s19
      %p292 = scmp.lt.s32.totalorder %s291, 7
      %s293 = scalar_select %p292, %s291, 7
      %s294 = smul.addr %s293, 2
      %s295 = smul.addr %s294, 8
      %s296 = scalar_lea.vmem %s8, %s295
      %p297 = scmp.lt.s32.totalorder %s19, 1
      %s298 = scalar_select %p297, %s19, 1
      %s299 = smul.addr %s298, 8
      %s300 = smul.addr %s299, 8
      %s301 = scalar_lea.vmem %s0, %s300
      %s302 = smul.u32 4, %s19
      %p303 = scmp.lt.s32.totalorder %s302, 7
      %s304 = scalar_select %p303, %s302, 7
      %s305 = smul.addr %s304, 2
      %s306 = smul.addr %s305, 8
      %s307 = scalar_lea.vmem %s8, %s306
      %s308 = smul.u32 4, %s19
      %v309 = vld [vmem:[%s1] sm:$0xff]
      %v310 = vld [vmem:[%s1 + $0x8] sm:$0xff]
      %v311 = vld [vmem:[%s1 + $0x10] sm:$0xff]
      %v312 = vld [vmem:[%s1 + $0x18] sm:$0xff]
      %v313 = vld [vmem:[%s2] sm:$0xff]
      %v314 = vld [vmem:[%s2 + $0x8] sm:$0xff]
      %v315 = vld [vmem:[%s3] sm:$0xff]
      %v316 = vld [vmem:[%s3 + $0x8] sm:$0xff]
      %v317 = vld [vmem:[%s3 + $0x10] sm:$0xff]
      %v318 = vld [vmem:[%s3 + $0x18] sm:$0xff]
      %v319 = vld [vmem:[%s301] sm:$0xff]
      %v320 = vld [vmem:[%s301 + $0x8] sm:$0xff]
      %v321 = vld [vmem:[%s301 + $0x10] sm:$0xff]
      %v322 = vld [vmem:[%s301 + $0x18] sm:$0xff]
      %v323 = vld [vmem:[%s301 + $0x20] sm:$0xff]
      %v324 = vld [vmem:[%s301 + $0x28] sm:$0xff]
      %v325 = vld [vmem:[%s301 + $0x30] sm:$0xff]
      %v326 = vld [vmem:[%s301 + $0x38] sm:$0xff]
      %vm327 = vcmask 130048
      %v329 = vsel %vm327, %v319, 0
      %v332 = vsel %vm327, %v320, 0
      %334 = vmatpush.msra.mxu0 0.0
      %335 = vmatpush.msra.mxu0 0.0
      %336 = vmatpush.msra.mxu0 0.0
      %337 = vmatpush.msra.mxu0 0.0
      %338 = vmatpush.msra.mxu0 0.0
      %339 = vmatpush.msra.mxu0 0.0
      %340 = vmatpush.msra.mxu0 0.0
      %341 = vmatpush.msra.mxu0 0.0
      %342 = vmatpush.msra.mxu0 0.0
      %343 = vmatpush.msra.mxu0 0.0
      %344 = vmatpush.msra.mxu0 0.0
      %345 = vmatpush.msra.mxu0 0.0
      %346 = vmatpush.msra.mxu0 0.0
      %347 = vmatpush.msra.mxu0 0.0
      %348 = vmatpush.msra.mxu0 %v314
      %349 = vmatpush.msra.mxu0 %v313
      %350 = vmatmul.f32.gmra.mxu0 %v329
      %v351 = vpop.f32.mrf.mxu0
      %v352 = vadd.f32 0.0, %v351
      %353 = vmatmul.f32.gmra.mxu0 %v332
      %v354 = vpop.f32.mrf.mxu0
      %v355 = vadd.f32 0.0, %v354
      %356 = vdwg.mxu0
      %v358 = vsel %vm327, %v309, 0
      %v361 = vsel %vm327, %v310, 0
      %v364 = vsel %vm327, %v311, 0
      %v367 = vsel %vm327, %v312, 0
      %369 = vmatpush.msra.mxu0 0.0
      %370 = vmatpush.msra.mxu0 0.0
      %371 = vmatpush.msra.mxu0 0.0
      %372 = vmatpush.msra.mxu0 0.0
      %373 = vmatpush.msra.mxu0 0.0
      %374 = vmatpush.msra.mxu0 0.0
      %375 = vmatpush.msra.mxu0 0.0
      %376 = vmatpush.msra.mxu0 0.0
      %377 = vmatpush.msra.mxu0 0.0
      %378 = vmatpush.msra.mxu0 0.0
      %379 = vmatpush.msra.mxu0 0.0
      %380 = vmatpush.msra.mxu0 0.0
      %381 = vmatpush.msra.mxu0 0.0
      %382 = vmatpush.msra.mxu0 0.0
      %383 = vmatpush.msra.mxu0 %v355
      %384 = vmatpush.msra.mxu0 %v352
      %385 = vmatmul.f32.gmra.mxu0 %v358
      %v386 = vpop.f32.mrf.mxu0
      %v387 = vadd.f32 0.0, %v386
      %388 = vmatmul.f32.gmra.mxu0 %v361
      %v389 = vpop.f32.mrf.mxu0
      %v390 = vadd.f32 0.0, %v389
      %391 = vmatmul.f32.gmra.mxu0 %v364
      %v392 = vpop.f32.mrf.mxu0
      %v393 = vadd.f32 0.0, %v392
      %394 = vmatmul.f32.gmra.mxu0 %v367
      %v395 = vpop.f32.mrf.mxu0
      %v396 = vadd.f32 0.0, %v395
      %397 = vdwg.mxu0
      %v399 = vsel %vm327, %v321, 0
      %v402 = vsel %vm327, %v322, 0
      %404 = vmatpush.msra.mxu0 0.0
      %405 = vmatpush.msra.mxu0 0.0
      %406 = vmatpush.msra.mxu0 0.0
      %407 = vmatpush.msra.mxu0 0.0
      %408 = vmatpush.msra.mxu0 0.0
      %409 = vmatpush.msra.mxu0 0.0
      %410 = vmatpush.msra.mxu0 0.0
      %411 = vmatpush.msra.mxu0 0.0
      %412 = vmatpush.msra.mxu0 0.0
      %413 = vmatpush.msra.mxu0 0.0
      %414 = vmatpush.msra.mxu0 0.0
      %415 = vmatpush.msra.mxu0 0.0
      %416 = vmatpush.msra.mxu0 0.0
      %417 = vmatpush.msra.mxu0 0.0
      %418 = vmatpush.msra.mxu0 %v314
      %419 = vmatpush.msra.mxu0 %v313
      %420 = vmatmul.f32.gmra.mxu0 %v399
      %v421 = vpop.f32.mrf.mxu0
      %v422 = vadd.f32 0.0, %v421
      %423 = vmatmul.f32.gmra.mxu0 %v402
      %v424 = vpop.f32.mrf.mxu0
      %v425 = vadd.f32 0.0, %v424
      %426 = vdwg.mxu0
      %427 = vmatpush.msra.mxu0 0.0
      %428 = vmatpush.msra.mxu0 0.0
      %429 = vmatpush.msra.mxu0 0.0
      %430 = vmatpush.msra.mxu0 0.0
      %431 = vmatpush.msra.mxu0 0.0
      %432 = vmatpush.msra.mxu0 0.0
      %433 = vmatpush.msra.mxu0 0.0
      %434 = vmatpush.msra.mxu0 0.0
      %435 = vmatpush.msra.mxu0 0.0
      %436 = vmatpush.msra.mxu0 0.0
      %437 = vmatpush.msra.mxu0 0.0
      %438 = vmatpush.msra.mxu0 0.0
      %439 = vmatpush.msra.mxu0 0.0
      %440 = vmatpush.msra.mxu0 0.0
      %441 = vmatpush.msra.mxu0 %v425
      %442 = vmatpush.msra.mxu0 %v422
      %443 = vmatmul.f32.gmra.mxu0 %v358
      %v444 = vpop.f32.mrf.mxu0
      %v445 = vadd.f32 0.0, %v444
      %446 = vmatmul.f32.gmra.mxu0 %v361
      %v447 = vpop.f32.mrf.mxu0
      %v448 = vadd.f32 0.0, %v447
      %449 = vmatmul.f32.gmra.mxu0 %v364
      %v450 = vpop.f32.mrf.mxu0
      %v451 = vadd.f32 0.0, %v450
      %452 = vmatmul.f32.gmra.mxu0 %v367
      %v453 = vpop.f32.mrf.mxu0
      %v454 = vadd.f32 0.0, %v453
      %455 = vdwg.mxu0
      %v457 = vsel %vm327, %v323, 0
      %v460 = vsel %vm327, %v324, 0
      %462 = vmatpush.msra.mxu0 0.0
      %463 = vmatpush.msra.mxu0 0.0
      %464 = vmatpush.msra.mxu0 0.0
      %465 = vmatpush.msra.mxu0 0.0
      %466 = vmatpush.msra.mxu0 0.0
      %467 = vmatpush.msra.mxu0 0.0
      %468 = vmatpush.msra.mxu0 0.0
      %469 = vmatpush.msra.mxu0 0.0
      %470 = vmatpush.msra.mxu0 0.0
      %471 = vmatpush.msra.mxu0 0.0
      %472 = vmatpush.msra.mxu0 0.0
      %473 = vmatpush.msra.mxu0 0.0
      %474 = vmatpush.msra.mxu0 0.0
      %475 = vmatpush.msra.mxu0 0.0
      %476 = vmatpush.msra.mxu0 %v314
      %477 = vmatpush.msra.mxu0 %v313
      %478 = vmatmul.f32.gmra.mxu0 %v457
      %v479 = vpop.f32.mrf.mxu0
      %v480 = vadd.f32 0.0, %v479
      %481 = vmatmul.f32.gmra.mxu0 %v460
      %v482 = vpop.f32.mrf.mxu0
      %v483 = vadd.f32 0.0, %v482
      %484 = vdwg.mxu0
      %485 = vmatpush.msra.mxu0 0.0
      %486 = vmatpush.msra.mxu0 0.0
      %487 = vmatpush.msra.mxu0 0.0
      %488 = vmatpush.msra.mxu0 0.0
      %489 = vmatpush.msra.mxu0 0.0
      %490 = vmatpush.msra.mxu0 0.0
      %491 = vmatpush.msra.mxu0 0.0
      %492 = vmatpush.msra.mxu0 0.0
      %493 = vmatpush.msra.mxu0 0.0
      %494 = vmatpush.msra.mxu0 0.0
      %495 = vmatpush.msra.mxu0 0.0
      %496 = vmatpush.msra.mxu0 0.0
      %497 = vmatpush.msra.mxu0 0.0
      %498 = vmatpush.msra.mxu0 0.0
      %499 = vmatpush.msra.mxu0 %v483
      %500 = vmatpush.msra.mxu0 %v480
      %501 = vmatmul.f32.gmra.mxu0 %v358
      %v502 = vpop.f32.mrf.mxu0
      %v503 = vadd.f32 0.0, %v502
      %504 = vmatmul.f32.gmra.mxu0 %v361
      %v505 = vpop.f32.mrf.mxu0
      %v506 = vadd.f32 0.0, %v505
      %507 = vmatmul.f32.gmra.mxu0 %v364
      %v508 = vpop.f32.mrf.mxu0
      %v509 = vadd.f32 0.0, %v508
      %510 = vmatmul.f32.gmra.mxu0 %v367
      %v511 = vpop.f32.mrf.mxu0
      %v512 = vadd.f32 0.0, %v511
      %513 = vdwg.mxu0
      %v515 = vsel %vm327, %v325, 0
      %v518 = vsel %vm327, %v326, 0
      %520 = vmatpush.msra.mxu0 0.0
      %521 = vmatpush.msra.mxu0 0.0
      %522 = vmatpush.msra.mxu0 0.0
      %523 = vmatpush.msra.mxu0 0.0
      %524 = vmatpush.msra.mxu0 0.0
      %525 = vmatpush.msra.mxu0 0.0
      %526 = vmatpush.msra.mxu0 0.0
      %527 = vmatpush.msra.mxu0 0.0
      %528 = vmatpush.msra.mxu0 0.0
      %529 = vmatpush.msra.mxu0 0.0
      %530 = vmatpush.msra.mxu0 0.0
      %531 = vmatpush.msra.mxu0 0.0
      %532 = vmatpush.msra.mxu0 0.0
      %533 = vmatpush.msra.mxu0 0.0
      %534 = vmatpush.msra.mxu0 %v314
      %535 = vmatpush.msra.mxu0 %v313
      %536 = vmatmul.f32.gmra.mxu0 %v515
      %v537 = vpop.f32.mrf.mxu0
      %v538 = vadd.f32 0.0, %v537
      %539 = vmatmul.f32.gmra.mxu0 %v518
      %v540 = vpop.f32.mrf.mxu0
      %v541 = vadd.f32 0.0, %v540
      %542 = vdwg.mxu0
      %543 = vmatpush.msra.mxu0 0.0
      %544 = vmatpush.msra.mxu0 0.0
      %545 = vmatpush.msra.mxu0 0.0
      %546 = vmatpush.msra.mxu0 0.0
      %547 = vmatpush.msra.mxu0 0.0
      %548 = vmatpush.msra.mxu0 0.0
      %549 = vmatpush.msra.mxu0 0.0
      %550 = vmatpush.msra.mxu0 0.0
      %551 = vmatpush.msra.mxu0 0.0
      %552 = vmatpush.msra.mxu0 0.0
      %553 = vmatpush.msra.mxu0 0.0
      %554 = vmatpush.msra.mxu0 0.0
      %555 = vmatpush.msra.mxu0 0.0
      %556 = vmatpush.msra.mxu0 0.0
      %557 = vmatpush.msra.mxu0 %v541
      %558 = vmatpush.msra.mxu0 %v538
      %559 = vmatmul.f32.gmra.mxu0 %v358
      %v560 = vpop.f32.mrf.mxu0
      %v561 = vadd.f32 0.0, %v560
      %562 = vmatmul.f32.gmra.mxu0 %v361
      %v563 = vpop.f32.mrf.mxu0
      %v564 = vadd.f32 0.0, %v563
      %565 = vmatmul.f32.gmra.mxu0 %v364
      %v566 = vpop.f32.mrf.mxu0
      %v567 = vadd.f32 0.0, %v566
      %568 = vmatmul.f32.gmra.mxu0 %v367
      %v569 = vpop.f32.mrf.mxu0
      %v570 = vadd.f32 0.0, %v569
      %571 = vdwg.mxu0
      %576 = vrot.lane.b32.xlu0 %v445, 32
      %v577 = vpop.permute.xlu0 %576
      %578 = vrot.lane.b32.xlu0 %v448, 32
      %v579 = vpop.permute.xlu0 %578
      %580 = vrot.lane.b32.xlu0 %v451, 32
      %v581 = vpop.permute.xlu0 %580
      %582 = vrot.lane.b32.xlu0 %v454, 32
      %v583 = vpop.permute.xlu0 %582
      %592 = vrot.lane.b32.xlu0 %v503, 64
      %v593 = vpop.permute.xlu0 %592
      %594 = vrot.lane.b32.xlu0 %v506, 64
      %v595 = vpop.permute.xlu0 %594
      %596 = vrot.lane.b32.xlu0 %v509, 64
      %v597 = vpop.permute.xlu0 %596
      %598 = vrot.lane.b32.xlu0 %v512, 64
      %v599 = vpop.permute.xlu0 %598
      %608 = vrot.lane.b32.xlu0 %v561, 96
      %v609 = vpop.permute.xlu0 %608
      %610 = vrot.lane.b32.xlu0 %v564, 96
      %v611 = vpop.permute.xlu0 %610
      %612 = vrot.lane.b32.xlu0 %v567, 96
      %v613 = vpop.permute.xlu0 %612
      %614 = vrot.lane.b32.xlu0 %v570, 96
      %v615 = vpop.permute.xlu0 %614
      %vm620 = vcmask 261120
      %v621 = vsel %vm620, %v387, %v577
      %v622 = vsel %vm620, %v390, %v579
      %v623 = vsel %vm620, %v393, %v581
      %v624 = vsel %vm620, %v396, %v583
      %vm625 = vcmask 523264
      %v626 = vsel %vm625, %v621, %v593
      %v627 = vsel %vm625, %v622, %v595
      %v628 = vsel %vm625, %v623, %v597
      %v629 = vsel %vm625, %v624, %v599
      %vm630 = vcmask 785408
      %v631 = vsel %vm630, %v626, %v609
      %v632 = vsel %vm630, %v627, %v611
      %v633 = vsel %vm630, %v628, %v613
      %v634 = vsel %vm630, %v629, %v615
      %v635 = vrot.slane %v631, 7
      %v636 = vrot.slane %v632, 7
      %v637 = vrot.slane %v633, 7
      %v638 = vrot.slane %v634, 7
      %v639 = vlaneseq
      %v640 = vshrl.u32 %v639, 7
      %vm641 = vcmp.lt.s32.totalorder %v640, 1
      %v642 = vsel %vm641, %v637, %v638
      %v643 = vsel %vm641, %v636, %v637
      %v644 = vsel %vm641, %v635, %v636
      %v645 = vsel %vm641, %v638, %v635
      %v646 = vpack.c.bf16 %v644, %v645
      %v647 = vpack.c.bf16 %v642, %v643
      %v648 = vld [vmem:[%s4] sm:$0xff]
      %v649 = vld [vmem:[%s4 + $0x8] sm:$0xff]
      %v650 = vld [vmem:[%s4 + $0x10] sm:$0xff]
      %v651 = vld [vmem:[%s4 + $0x18] sm:$0xff]
      %v652 = vld [vmem:[%s4 + $0x20] sm:$0xff]
      %v653 = vld [vmem:[%s4 + $0x28] sm:$0xff]
      %v654 = vld [vmem:[%s4 + $0x30] sm:$0xff]
      %v655 = vld [vmem:[%s4 + $0x38] sm:$0xff]
      %v656 = vld [vmem:[%s4 + $0x40] sm:$0xff]
      %v657 = vld [vmem:[%s4 + $0x48] sm:$0xff]
      %v658 = vld [vmem:[%s4 + $0x50] sm:$0xff]
      %v659 = vld [vmem:[%s4 + $0x58] sm:$0xff]
      %v660 = vld [vmem:[%s4 + $0x60] sm:$0xff]
      %v661 = vld [vmem:[%s4 + $0x68] sm:$0xff]
      %v662 = vld [vmem:[%s4 + $0x70] sm:$0xff]
      %v663 = vld [vmem:[%s4 + $0x78] sm:$0xff]
      %v664 = vpack.c.bf16 %v632, %v631
      %v665 = vpack.c.bf16 %v634, %v633
      %s666 = scalar_lea.vmem %s4, 128
      %v667 = vld [vmem:[%s666] sm:$0xff]
      %v668 = vld [vmem:[%s666 + $0x8] sm:$0xff]
      %v669 = vld [vmem:[%s666 + $0x10] sm:$0xff]
      %v670 = vld [vmem:[%s666 + $0x18] sm:$0xff]
      %v671 = vld [vmem:[%s666 + $0x20] sm:$0xff]
      %v672 = vld [vmem:[%s666 + $0x28] sm:$0xff]
      %v673 = vld [vmem:[%s666 + $0x30] sm:$0xff]
      %v674 = vld [vmem:[%s666 + $0x38] sm:$0xff]
      %v675 = vld [vmem:[%s666 + $0x40] sm:$0xff]
      %v676 = vld [vmem:[%s666 + $0x48] sm:$0xff]
      %v677 = vld [vmem:[%s666 + $0x50] sm:$0xff]
      %v678 = vld [vmem:[%s666 + $0x58] sm:$0xff]
      %v679 = vld [vmem:[%s666 + $0x60] sm:$0xff]
      %v680 = vld [vmem:[%s666 + $0x68] sm:$0xff]
      %v681 = vld [vmem:[%s666 + $0x70] sm:$0xff]
      %v682 = vld [vmem:[%s666 + $0x78] sm:$0xff]
      %v699 = vunpack.c.l.b16 %v667
      %v700 = vunpack.c.h.b16 %v667
      %v701 = vunpack.c.l.b16 %v668
      %v702 = vunpack.c.h.b16 %v668
      %v703 = vunpack.c.l.b16 %v669
      %v704 = vunpack.c.h.b16 %v669
      %v705 = vunpack.c.l.b16 %v670
      %v706 = vunpack.c.h.b16 %v670
      %v707 = vunpack.c.l.b16 %v671
      %v708 = vunpack.c.h.b16 %v671
      %v709 = vunpack.c.l.b16 %v672
      %v710 = vunpack.c.h.b16 %v672
      %v711 = vunpack.c.l.b16 %v673
      %v712 = vunpack.c.h.b16 %v673
      %v713 = vunpack.c.l.b16 %v674
      %v714 = vunpack.c.h.b16 %v674
      %v715 = vunpack.c.l.b16 %v675
      %v716 = vunpack.c.h.b16 %v675
      %v717 = vunpack.c.l.b16 %v676
      %v718 = vunpack.c.h.b16 %v676
      %v719 = vunpack.c.l.b16 %v677
      %v720 = vunpack.c.h.b16 %v677
      %v721 = vunpack.c.l.b16 %v678
      %v722 = vunpack.c.h.b16 %v678
      %v723 = vunpack.c.l.b16 %v679
      %v724 = vunpack.c.h.b16 %v679
      %v725 = vunpack.c.l.b16 %v680
      %v726 = vunpack.c.h.b16 %v680
      %v727 = vunpack.c.l.b16 %v681
      %v728 = vunpack.c.h.b16 %v681
      %v729 = vunpack.c.l.b16 %v682
      %v730 = vunpack.c.h.b16 %v682
      %v731 = vpack.c.b16 %v701, %v699
      %v732 = vpack.c.b16 %v702, %v700
      %v733 = vpack.c.b16 %v705, %v703
      %v734 = vpack.c.b16 %v706, %v704
      %v735 = vpack.c.b16 %v709, %v707
      %v736 = vpack.c.b16 %v710, %v708
      %v737 = vpack.c.b16 %v713, %v711
      %v738 = vpack.c.b16 %v714, %v712
      %v739 = vpack.c.b16 %v717, %v715
      %v740 = vpack.c.b16 %v718, %v716
      %v741 = vpack.c.b16 %v721, %v719
      %v742 = vpack.c.b16 %v722, %v720
      %v743 = vpack.c.b16 %v725, %v723
      %v744 = vpack.c.b16 %v726, %v724
      %v745 = vpack.c.b16 %v729, %v727
      %v746 = vpack.c.b16 %v730, %v728
      %763 = vmatpush.bf16.msra.mxu0 %v745
      %764 = vmatpush.bf16.msra.mxu0 %v743
      %765 = vmatpush.bf16.msra.mxu0 %v741
      %766 = vmatpush.bf16.msra.mxu0 %v739
      %767 = vmatpush.bf16.msra.mxu0 %v737
      %768 = vmatpush.bf16.msra.mxu0 %v735
      %769 = vmatpush.bf16.msra.mxu0 %v733
      %770 = vmatpush.bf16.msra.mxu0 %v731
      %771 = vmatmul.bf16.gmra.mxu0 %v664
      %v772 = vpop.f32.mrf.mxu0
      %v773 = vadd.f32 0.0, %v772
      %v774 = vpop.f32.mrf.mxu0
      %v775 = vadd.f32 0.0, %v774
      %776 = vmatmul.bf16.gmra.mxu0 %v665
      %v777 = vpop.f32.mrf.mxu0
      %v778 = vadd.f32 0.0, %v777
      %v779 = vpop.f32.mrf.mxu0
      %v780 = vadd.f32 0.0, %v779
      %781 = vdwg.mxu0
      %782 = vmatpush.bf16.msra.mxu0 %v746
      %783 = vmatpush.bf16.msra.mxu0 %v744
      %784 = vmatpush.bf16.msra.mxu0 %v742
      %785 = vmatpush.bf16.msra.mxu0 %v740
      %786 = vmatpush.bf16.msra.mxu0 %v738
      %787 = vmatpush.bf16.msra.mxu0 %v736
      %788 = vmatpush.bf16.msra.mxu0 %v734
      %789 = vmatpush.bf16.msra.mxu0 %v732
      %790 = vmatmul.bf16.gmra.mxu0 %v664
      %v791 = vpop.f32.mrf.mxu0
      %v792 = vadd.f32 0.0, %v791
      %v793 = vpop.f32.mrf.mxu0
      %v794 = vadd.f32 0.0, %v793
      %795 = vmatmul.bf16.gmra.mxu0 %v665
      %v796 = vpop.f32.mrf.mxu0
      %v797 = vadd.f32 0.0, %v796
      %v798 = vpop.f32.mrf.mxu0
      %v799 = vadd.f32 0.0, %v798
      %800 = vdwg.mxu0
      %v817 = vunpack.c.l.b16 %v648
      %v818 = vunpack.c.h.b16 %v648
      %v819 = vunpack.c.l.b16 %v649
      %v820 = vunpack.c.h.b16 %v649
      %v821 = vunpack.c.l.b16 %v650
      %v822 = vunpack.c.h.b16 %v650
      %v823 = vunpack.c.l.b16 %v651
      %v824 = vunpack.c.h.b16 %v651
      %v825 = vunpack.c.l.b16 %v652
      %v826 = vunpack.c.h.b16 %v652
      %v827 = vunpack.c.l.b16 %v653
      %v828 = vunpack.c.h.b16 %v653
      %v829 = vunpack.c.l.b16 %v654
      %v830 = vunpack.c.h.b16 %v654
      %v831 = vunpack.c.l.b16 %v655
      %v832 = vunpack.c.h.b16 %v655
      %v833 = vunpack.c.l.b16 %v656
      %v834 = vunpack.c.h.b16 %v656
      %v835 = vunpack.c.l.b16 %v657
      %v836 = vunpack.c.h.b16 %v657
      %v837 = vunpack.c.l.b16 %v658
      %v838 = vunpack.c.h.b16 %v658
      %v839 = vunpack.c.l.b16 %v659
      %v840 = vunpack.c.h.b16 %v659
      %v841 = vunpack.c.l.b16 %v660
      %v842 = vunpack.c.h.b16 %v660
      %v843 = vunpack.c.l.b16 %v661
      %v844 = vunpack.c.h.b16 %v661
      %v845 = vunpack.c.l.b16 %v662
      %v846 = vunpack.c.h.b16 %v662
      %v847 = vunpack.c.l.b16 %v663
      %v848 = vunpack.c.h.b16 %v663
      %v849 = vpack.c.b16 %v819, %v817
      %v850 = vpack.c.b16 %v820, %v818
      %v851 = vpack.c.b16 %v823, %v821
      %v852 = vpack.c.b16 %v824, %v822
      %v853 = vpack.c.b16 %v827, %v825
      %v854 = vpack.c.b16 %v828, %v826
      %v855 = vpack.c.b16 %v831, %v829
      %v856 = vpack.c.b16 %v832, %v830
      %v857 = vpack.c.b16 %v835, %v833
      %v858 = vpack.c.b16 %v836, %v834
      %v859 = vpack.c.b16 %v839, %v837
      %v860 = vpack.c.b16 %v840, %v838
      %v861 = vpack.c.b16 %v843, %v841
      %v862 = vpack.c.b16 %v844, %v842
      %v863 = vpack.c.b16 %v847, %v845
      %v864 = vpack.c.b16 %v848, %v846
      %881 = vmatpush.bf16.msra.mxu0 %v863
      %882 = vmatpush.bf16.msra.mxu0 %v861
      %883 = vmatpush.bf16.msra.mxu0 %v859
      %884 = vmatpush.bf16.msra.mxu0 %v857
      %885 = vmatpush.bf16.msra.mxu0 %v855
      %886 = vmatpush.bf16.msra.mxu0 %v853
      %887 = vmatpush.bf16.msra.mxu0 %v851
      %888 = vmatpush.bf16.msra.mxu0 %v849
      %889 = vmatmul.bf16.gmra.mxu0 %v646
      %v890 = vpop.f32.mrf.mxu0
      %v891 = vadd.f32 %v773, %v890
      %v892 = vpop.f32.mrf.mxu0
      %v893 = vadd.f32 %v775, %v892
      %894 = vmatmul.bf16.gmra.mxu0 %v647
      %v895 = vpop.f32.mrf.mxu0
      %v896 = vadd.f32 %v778, %v895
      %v897 = vpop.f32.mrf.mxu0
      %v898 = vadd.f32 %v780, %v897
      %899 = vdwg.mxu0
      %900 = vmatpush.bf16.msra.mxu0 %v864
      %901 = vmatpush.bf16.msra.mxu0 %v862
      %902 = vmatpush.bf16.msra.mxu0 %v860
      %903 = vmatpush.bf16.msra.mxu0 %v858
      %904 = vmatpush.bf16.msra.mxu0 %v856
      %905 = vmatpush.bf16.msra.mxu0 %v854
      %906 = vmatpush.bf16.msra.mxu0 %v852
      %907 = vmatpush.bf16.msra.mxu0 %v850
      %908 = vmatmul.bf16.gmra.mxu0 %v646
      %v909 = vpop.f32.mrf.mxu0
      %v910 = vadd.f32 %v792, %v909
      %v911 = vpop.f32.mrf.mxu0
      %v912 = vadd.f32 %v794, %v911
      %913 = vmatmul.bf16.gmra.mxu0 %v647
      %v914 = vpop.f32.mrf.mxu0
      %v915 = vadd.f32 %v797, %v914
      %v916 = vpop.f32.mrf.mxu0
      %v917 = vadd.f32 %v799, %v916
      %918 = vdwg.mxu0
      %v919 = vrot.slane %v631, 1
      %v920 = vrot.slane %v632, 1
      %v921 = vrot.slane %v633, 1
      %v922 = vrot.slane %v634, 1
      %vm923 = vcmp.lt.s32.totalorder %v640, 7
      %v924 = vsel %vm923, %v921, %v922
      %v925 = vsel %vm923, %v920, %v921
      %v926 = vsel %vm923, %v919, %v920
      %v927 = vsel %vm923, %v922, %v919
      %v928 = vpack.c.bf16 %v925, %v926
      %v929 = vpack.c.bf16 %v927, %v924
      %s930 = scalar_lea.vmem %s4, 256
      %v931 = vld [vmem:[%s930] sm:$0xff]
      %v932 = vld [vmem:[%s930 + $0x8] sm:$0xff]
      %v933 = vld [vmem:[%s930 + $0x10] sm:$0xff]
      %v934 = vld [vmem:[%s930 + $0x18] sm:$0xff]
      %v935 = vld [vmem:[%s930 + $0x20] sm:$0xff]
      %v936 = vld [vmem:[%s930 + $0x28] sm:$0xff]
      %v937 = vld [vmem:[%s930 + $0x30] sm:$0xff]
      %v938 = vld [vmem:[%s930 + $0x38] sm:$0xff]
      %v939 = vld [vmem:[%s930 + $0x40] sm:$0xff]
      %v940 = vld [vmem:[%s930 + $0x48] sm:$0xff]
      %v941 = vld [vmem:[%s930 + $0x50] sm:$0xff]
      %v942 = vld [vmem:[%s930 + $0x58] sm:$0xff]
      %v943 = vld [vmem:[%s930 + $0x60] sm:$0xff]
      %v944 = vld [vmem:[%s930 + $0x68] sm:$0xff]
      %v945 = vld [vmem:[%s930 + $0x70] sm:$0xff]
      %v946 = vld [vmem:[%s930 + $0x78] sm:$0xff]
      %v963 = vunpack.c.l.b16 %v931
      %v964 = vunpack.c.h.b16 %v931
      %v965 = vunpack.c.l.b16 %v932
      %v966 = vunpack.c.h.b16 %v932
      %v967 = vunpack.c.l.b16 %v933
      %v968 = vunpack.c.h.b16 %v933
      %v969 = vunpack.c.l.b16 %v934
      %v970 = vunpack.c.h.b16 %v934
      %v971 = vunpack.c.l.b16 %v935
      %v972 = vunpack.c.h.b16 %v935
      %v973 = vunpack.c.l.b16 %v936
      %v974 = vunpack.c.h.b16 %v936
      %v975 = vunpack.c.l.b16 %v937
      %v976 = vunpack.c.h.b16 %v937
      %v977 = vunpack.c.l.b16 %v938
      %v978 = vunpack.c.h.b16 %v938
      %v979 = vunpack.c.l.b16 %v939
      %v980 = vunpack.c.h.b16 %v939
      %v981 = vunpack.c.l.b16 %v940
      %v982 = vunpack.c.h.b16 %v940
      %v983 = vunpack.c.l.b16 %v941
      %v984 = vunpack.c.h.b16 %v941
      %v985 = vunpack.c.l.b16 %v942
      %v986 = vunpack.c.h.b16 %v942
      %v987 = vunpack.c.l.b16 %v943
      %v988 = vunpack.c.h.b16 %v943
      %v989 = vunpack.c.l.b16 %v944
      %v990 = vunpack.c.h.b16 %v944
      %v991 = vunpack.c.l.b16 %v945
      %v992 = vunpack.c.h.b16 %v945
      %v993 = vunpack.c.l.b16 %v946
      %v994 = vunpack.c.h.b16 %v946
      %v995 = vpack.c.b16 %v965, %v963
      %v996 = vpack.c.b16 %v966, %v964
      %v997 = vpack.c.b16 %v969, %v967
      %v998 = vpack.c.b16 %v970, %v968
      %v999 = vpack.c.b16 %v973, %v971
      %v1000 = vpack.c.b16 %v974, %v972
      %v1001 = vpack.c.b16 %v977, %v975
      %v1002 = vpack.c.b16 %v978, %v976
      %v1003 = vpack.c.b16 %v981, %v979
      %v1004 = vpack.c.b16 %v982, %v980
      %v1005 = vpack.c.b16 %v985, %v983
      %v1006 = vpack.c.b16 %v986, %v984
      %v1007 = vpack.c.b16 %v989, %v987
      %v1008 = vpack.c.b16 %v990, %v988
      %v1009 = vpack.c.b16 %v993, %v991
      %v1010 = vpack.c.b16 %v994, %v992
      %1027 = vmatpush.bf16.msra.mxu0 %v1009
      %1028 = vmatpush.bf16.msra.mxu0 %v1007
      %1029 = vmatpush.bf16.msra.mxu0 %v1005
      %1030 = vmatpush.bf16.msra.mxu0 %v1003
      %1031 = vmatpush.bf16.msra.mxu0 %v1001
      %1032 = vmatpush.bf16.msra.mxu0 %v999
      %1033 = vmatpush.bf16.msra.mxu0 %v997
      %1034 = vmatpush.bf16.msra.mxu0 %v995
      %1035 = vmatmul.bf16.gmra.mxu0 %v928
      %v1036 = vpop.f32.mrf.mxu0
      %v1037 = vadd.f32 0.0, %v1036
      %v1038 = vpop.f32.mrf.mxu0
      %v1039 = vadd.f32 0.0, %v1038
      %1040 = vmatmul.bf16.gmra.mxu0 %v929
      %v1041 = vpop.f32.mrf.mxu0
      %v1042 = vadd.f32 0.0, %v1041
      %v1043 = vpop.f32.mrf.mxu0
      %v1044 = vadd.f32 0.0, %v1043
      %1045 = vdwg.mxu0
      %1046 = vmatpush.bf16.msra.mxu0 %v1010
      %1047 = vmatpush.bf16.msra.mxu0 %v1008
      %1048 = vmatpush.bf16.msra.mxu0 %v1006
      %1049 = vmatpush.bf16.msra.mxu0 %v1004
      %1050 = vmatpush.bf16.msra.mxu0 %v1002
      %1051 = vmatpush.bf16.msra.mxu0 %v1000
      %1052 = vmatpush.bf16.msra.mxu0 %v998
      %1053 = vmatpush.bf16.msra.mxu0 %v996
      %1054 = vmatmul.bf16.gmra.mxu0 %v928
      %v1055 = vpop.f32.mrf.mxu0
      %v1056 = vadd.f32 0.0, %v1055
      %v1057 = vpop.f32.mrf.mxu0
      %v1058 = vadd.f32 0.0, %v1057
      %1059 = vmatmul.bf16.gmra.mxu0 %v929
      %v1060 = vpop.f32.mrf.mxu0
      %v1061 = vadd.f32 0.0, %v1060
      %v1062 = vpop.f32.mrf.mxu0
      %v1063 = vadd.f32 0.0, %v1062
      %1064 = vdwg.mxu0
      %v1065 = vadd.f32 %v891, %v1037
      %v1066 = vadd.f32 %v910, %v1056
      %v1067 = vadd.f32 %v893, %v1039
      %v1068 = vadd.f32 %v912, %v1058
      %v1069 = vadd.f32 %v896, %v1042
      %v1070 = vadd.f32 %v915, %v1061
      %v1071 = vadd.f32 %v898, %v1044
      %v1072 = vadd.f32 %v917, %v1063
      %v1073 = vld [vmem:[%s5] sm:$0x3]
      %v1075 = vperm.slane %v1073, 0
      %v1076 = vperm.slane %v1073, 1
      %v1079 = vadd.f32 %v1065, %v1075
      %v1080 = vadd.f32 %v1066, %v1076
      %v1081 = vadd.f32 %v1067, %v1075
      %v1082 = vadd.f32 %v1068, %v1076
      %v1083 = vadd.f32 %v1069, %v1075
      %v1084 = vadd.f32 %v1070, %v1076
      %v1085 = vadd.f32 %v1071, %v1075
      %v1086 = vadd.f32 %v1072, %v1076
      %v1087 = vmax.f32 %v1079, 0.0
      %v1088 = vmax.f32 %v1080, 0.0
      %v1089 = vmax.f32 %v1081, 0.0
      %v1090 = vmax.f32 %v1082, 0.0
      %v1091 = vmax.f32 %v1083, 0.0
      %v1092 = vmax.f32 %v1084, 0.0
      %v1093 = vmax.f32 %v1085, 0.0
      %v1094 = vmax.f32 %v1086, 0.0
      %1096 = vset.pattern.permute.xlu0 0
      %1097 = vperm.xlu0 %1096, %v315
      %v1098 = vpop.permute.xlu0 %1097
      %1101 = vset.pattern.permute.xlu0 0
      %1102 = vperm.xlu0 %1101, %v316
      %v1103 = vpop.permute.xlu0 %1102
      %1106 = vset.pattern.permute.xlu0 0
      %1107 = vperm.xlu0 %1106, %v317
      %v1108 = vpop.permute.xlu0 %1107
      %1111 = vset.pattern.permute.xlu0 0
      %1112 = vperm.xlu0 %1111, %v318
      %v1113 = vpop.permute.xlu0 %1112
      %v1115 = vmul.f32 %v1098, %v1087
      %v1116 = vmul.f32 %v1098, %v1088
      %v1117 = vmul.f32 %v1103, %v1089
      %v1118 = vmul.f32 %v1103, %v1090
      %v1119 = vmul.f32 %v1108, %v1091
      %v1120 = vmul.f32 %v1108, %v1092
      %v1121 = vmul.f32 %v1113, %v1093
      %v1122 = vmul.f32 %v1113, %v1094
      %v1123 = vrot.slane %v1115, 7
      %v1124 = vrot.slane %v1116, 7
      %v1125 = vrot.slane %v1117, 7
      %v1126 = vrot.slane %v1118, 7
      %v1127 = vrot.slane %v1119, 7
      %v1128 = vrot.slane %v1120, 7
      %v1129 = vrot.slane %v1121, 7
      %v1130 = vrot.slane %v1122, 7
      %v1131 = vsel %vm641, %v1127, %v1129
      %v1132 = vsel %vm641, %v1128, %v1130
      %v1133 = vsel %vm641, %v1125, %v1127
      %v1134 = vsel %vm641, %v1126, %v1128
      %v1135 = vsel %vm641, %v1123, %v1125
      %v1136 = vsel %vm641, %v1124, %v1126
      %v1137 = vsel %vm641, %v1129, %v1123
      %v1138 = vsel %vm641, %v1130, %v1124
      %v1139 = vpack.c.bf16 %v1135, %v1137
      %v1140 = vpack.c.bf16 %v1136, %v1138
      %v1141 = vpack.c.bf16 %v1131, %v1133
      %v1142 = vpack.c.bf16 %v1132, %v1134
      %v1143 = vld [vmem:[%s6] sm:$0xff]
      %v1144 = vld [vmem:[%s6 + $0x8] sm:$0xff]
      %v1145 = vld [vmem:[%s6 + $0x10] sm:$0xff]
      %v1146 = vld [vmem:[%s6 + $0x18] sm:$0xff]
      %v1147 = vld [vmem:[%s6 + $0x20] sm:$0xff]
      %v1148 = vld [vmem:[%s6 + $0x28] sm:$0xff]
      %v1149 = vld [vmem:[%s6 + $0x30] sm:$0xff]
      %v1150 = vld [vmem:[%s6 + $0x38] sm:$0xff]
      %v1151 = vld [vmem:[%s6 + $0x40] sm:$0xff]
      %v1152 = vld [vmem:[%s6 + $0x48] sm:$0xff]
      %v1153 = vld [vmem:[%s6 + $0x50] sm:$0xff]
      %v1154 = vld [vmem:[%s6 + $0x58] sm:$0xff]
      %v1155 = vld [vmem:[%s6 + $0x60] sm:$0xff]
      %v1156 = vld [vmem:[%s6 + $0x68] sm:$0xff]
      %v1157 = vld [vmem:[%s6 + $0x70] sm:$0xff]
      %v1158 = vld [vmem:[%s6 + $0x78] sm:$0xff]
      %v1159 = vld [vmem:[%s6 + $0x80] sm:$0xff]
      %v1160 = vld [vmem:[%s6 + $0x88] sm:$0xff]
      %v1161 = vld [vmem:[%s6 + $0x90] sm:$0xff]
      %v1162 = vld [vmem:[%s6 + $0x98] sm:$0xff]
      %v1163 = vld [vmem:[%s6 + $0xa0] sm:$0xff]
      %v1164 = vld [vmem:[%s6 + $0xa8] sm:$0xff]
      %v1165 = vld [vmem:[%s6 + $0xb0] sm:$0xff]
      %v1166 = vld [vmem:[%s6 + $0xb8] sm:$0xff]
      %v1167 = vld [vmem:[%s6 + $0xc0] sm:$0xff]
      %v1168 = vld [vmem:[%s6 + $0xc8] sm:$0xff]
      %v1169 = vld [vmem:[%s6 + $0xd0] sm:$0xff]
      %v1170 = vld [vmem:[%s6 + $0xd8] sm:$0xff]
      %v1171 = vld [vmem:[%s6 + $0xe0] sm:$0xff]
      %v1172 = vld [vmem:[%s6 + $0xe8] sm:$0xff]
      %v1173 = vld [vmem:[%s6 + $0xf0] sm:$0xff]
      %v1174 = vld [vmem:[%s6 + $0xf8] sm:$0xff]
      %v1175 = vpack.c.bf16 %v1117, %v1115
      %v1176 = vpack.c.bf16 %v1118, %v1116
      %v1177 = vpack.c.bf16 %v1121, %v1119
      %v1178 = vpack.c.bf16 %v1122, %v1120
      %s1179 = scalar_lea.vmem %s6, 256
      %v1180 = vld [vmem:[%s1179] sm:$0xff]
      %v1181 = vld [vmem:[%s1179 + $0x8] sm:$0xff]
      %v1182 = vld [vmem:[%s1179 + $0x10] sm:$0xff]
      %v1183 = vld [vmem:[%s1179 + $0x18] sm:$0xff]
      %v1184 = vld [vmem:[%s1179 + $0x20] sm:$0xff]
      %v1185 = vld [vmem:[%s1179 + $0x28] sm:$0xff]
      %v1186 = vld [vmem:[%s1179 + $0x30] sm:$0xff]
      %v1187 = vld [vmem:[%s1179 + $0x38] sm:$0xff]
      %v1188 = vld [vmem:[%s1179 + $0x40] sm:$0xff]
      %v1189 = vld [vmem:[%s1179 + $0x48] sm:$0xff]
      %v1190 = vld [vmem:[%s1179 + $0x50] sm:$0xff]
      %v1191 = vld [vmem:[%s1179 + $0x58] sm:$0xff]
      %v1192 = vld [vmem:[%s1179 + $0x60] sm:$0xff]
      %v1193 = vld [vmem:[%s1179 + $0x68] sm:$0xff]
      %v1194 = vld [vmem:[%s1179 + $0x70] sm:$0xff]
      %v1195 = vld [vmem:[%s1179 + $0x78] sm:$0xff]
      %v1196 = vld [vmem:[%s1179 + $0x80] sm:$0xff]
      %v1197 = vld [vmem:[%s1179 + $0x88] sm:$0xff]
      %v1198 = vld [vmem:[%s1179 + $0x90] sm:$0xff]
      %v1199 = vld [vmem:[%s1179 + $0x98] sm:$0xff]
      %v1200 = vld [vmem:[%s1179 + $0xa0] sm:$0xff]
      %v1201 = vld [vmem:[%s1179 + $0xa8] sm:$0xff]
      %v1202 = vld [vmem:[%s1179 + $0xb0] sm:$0xff]
      %v1203 = vld [vmem:[%s1179 + $0xb8] sm:$0xff]
      %v1204 = vld [vmem:[%s1179 + $0xc0] sm:$0xff]
      %v1205 = vld [vmem:[%s1179 + $0xc8] sm:$0xff]
      %v1206 = vld [vmem:[%s1179 + $0xd0] sm:$0xff]
      %v1207 = vld [vmem:[%s1179 + $0xd8] sm:$0xff]
      %v1208 = vld [vmem:[%s1179 + $0xe0] sm:$0xff]
      %v1209 = vld [vmem:[%s1179 + $0xe8] sm:$0xff]
      %v1210 = vld [vmem:[%s1179 + $0xf0] sm:$0xff]
      %v1211 = vld [vmem:[%s1179 + $0xf8] sm:$0xff]
      %v1244 = vunpack.c.l.b16 %v1180
      %v1245 = vunpack.c.h.b16 %v1180
      %v1246 = vunpack.c.l.b16 %v1181
      %v1247 = vunpack.c.h.b16 %v1181
      %v1248 = vunpack.c.l.b16 %v1182
      %v1249 = vunpack.c.h.b16 %v1182
      %v1250 = vunpack.c.l.b16 %v1183
      %v1251 = vunpack.c.h.b16 %v1183
      %v1252 = vunpack.c.l.b16 %v1184
      %v1253 = vunpack.c.h.b16 %v1184
      %v1254 = vunpack.c.l.b16 %v1185
      %v1255 = vunpack.c.h.b16 %v1185
      %v1256 = vunpack.c.l.b16 %v1186
      %v1257 = vunpack.c.h.b16 %v1186
      %v1258 = vunpack.c.l.b16 %v1187
      %v1259 = vunpack.c.h.b16 %v1187
      %v1260 = vunpack.c.l.b16 %v1188
      %v1261 = vunpack.c.h.b16 %v1188
      %v1262 = vunpack.c.l.b16 %v1189
      %v1263 = vunpack.c.h.b16 %v1189
      %v1264 = vunpack.c.l.b16 %v1190
      %v1265 = vunpack.c.h.b16 %v1190
      %v1266 = vunpack.c.l.b16 %v1191
      %v1267 = vunpack.c.h.b16 %v1191
      %v1268 = vunpack.c.l.b16 %v1192
      %v1269 = vunpack.c.h.b16 %v1192
      %v1270 = vunpack.c.l.b16 %v1193
      %v1271 = vunpack.c.h.b16 %v1193
      %v1272 = vunpack.c.l.b16 %v1194
      %v1273 = vunpack.c.h.b16 %v1194
      %v1274 = vunpack.c.l.b16 %v1195
      %v1275 = vunpack.c.h.b16 %v1195
      %v1276 = vunpack.c.l.b16 %v1196
      %v1277 = vunpack.c.h.b16 %v1196
      %v1278 = vunpack.c.l.b16 %v1197
      %v1279 = vunpack.c.h.b16 %v1197
      %v1280 = vunpack.c.l.b16 %v1198
      %v1281 = vunpack.c.h.b16 %v1198
      %v1282 = vunpack.c.l.b16 %v1199
      %v1283 = vunpack.c.h.b16 %v1199
      %v1284 = vunpack.c.l.b16 %v1200
      %v1285 = vunpack.c.h.b16 %v1200
      %v1286 = vunpack.c.l.b16 %v1201
      %v1287 = vunpack.c.h.b16 %v1201
      %v1288 = vunpack.c.l.b16 %v1202
      %v1289 = vunpack.c.h.b16 %v1202
      %v1290 = vunpack.c.l.b16 %v1203
      %v1291 = vunpack.c.h.b16 %v1203
      %v1292 = vunpack.c.l.b16 %v1204
      %v1293 = vunpack.c.h.b16 %v1204
      %v1294 = vunpack.c.l.b16 %v1205
      %v1295 = vunpack.c.h.b16 %v1205
      %v1296 = vunpack.c.l.b16 %v1206
      %v1297 = vunpack.c.h.b16 %v1206
      %v1298 = vunpack.c.l.b16 %v1207
      %v1299 = vunpack.c.h.b16 %v1207
      %v1300 = vunpack.c.l.b16 %v1208
      %v1301 = vunpack.c.h.b16 %v1208
      %v1302 = vunpack.c.l.b16 %v1209
      %v1303 = vunpack.c.h.b16 %v1209
      %v1304 = vunpack.c.l.b16 %v1210
      %v1305 = vunpack.c.h.b16 %v1210
      %v1306 = vunpack.c.l.b16 %v1211
      %v1307 = vunpack.c.h.b16 %v1211
      %v1308 = vpack.c.b16 %v1246, %v1244
      %v1309 = vpack.c.b16 %v1247, %v1245
      %v1310 = vpack.c.b16 %v1250, %v1248
      %v1311 = vpack.c.b16 %v1251, %v1249
      %v1312 = vpack.c.b16 %v1254, %v1252
      %v1313 = vpack.c.b16 %v1255, %v1253
      %v1314 = vpack.c.b16 %v1258, %v1256
      %v1315 = vpack.c.b16 %v1259, %v1257
      %v1316 = vpack.c.b16 %v1262, %v1260
      %v1317 = vpack.c.b16 %v1263, %v1261
      %v1318 = vpack.c.b16 %v1266, %v1264
      %v1319 = vpack.c.b16 %v1267, %v1265
      %v1320 = vpack.c.b16 %v1270, %v1268
      %v1321 = vpack.c.b16 %v1271, %v1269
      %v1322 = vpack.c.b16 %v1274, %v1272
      %v1323 = vpack.c.b16 %v1275, %v1273
      %v1324 = vpack.c.b16 %v1278, %v1276
      %v1325 = vpack.c.b16 %v1279, %v1277
      %v1326 = vpack.c.b16 %v1282, %v1280
      %v1327 = vpack.c.b16 %v1283, %v1281
      %v1328 = vpack.c.b16 %v1286, %v1284
      %v1329 = vpack.c.b16 %v1287, %v1285
      %v1330 = vpack.c.b16 %v1290, %v1288
      %v1331 = vpack.c.b16 %v1291, %v1289
      %v1332 = vpack.c.b16 %v1294, %v1292
      %v1333 = vpack.c.b16 %v1295, %v1293
      %v1334 = vpack.c.b16 %v1298, %v1296
      %v1335 = vpack.c.b16 %v1299, %v1297
      %v1336 = vpack.c.b16 %v1302, %v1300
      %v1337 = vpack.c.b16 %v1303, %v1301
      %v1338 = vpack.c.b16 %v1306, %v1304
      %v1339 = vpack.c.b16 %v1307, %v1305
      %1372 = vmatpush.bf16.msra.mxu0 %v1322
      %1373 = vmatpush.bf16.msra.mxu0 %v1320
      %1374 = vmatpush.bf16.msra.mxu0 %v1318
      %1375 = vmatpush.bf16.msra.mxu0 %v1316
      %1376 = vmatpush.bf16.msra.mxu0 %v1314
      %1377 = vmatpush.bf16.msra.mxu0 %v1312
      %1378 = vmatpush.bf16.msra.mxu0 %v1310
      %1379 = vmatpush.bf16.msra.mxu0 %v1308
      %1380 = vmatmul.bf16.gmra.mxu0 %v1175
      %v1381 = vpop.f32.mrf.mxu0
      %v1382 = vadd.f32 0.0, %v1381
      %v1383 = vpop.f32.mrf.mxu0
      %v1384 = vadd.f32 0.0, %v1383
      %1385 = vmatmul.bf16.gmra.mxu0 %v1177
      %v1386 = vpop.f32.mrf.mxu0
      %v1387 = vadd.f32 0.0, %v1386
      %v1388 = vpop.f32.mrf.mxu0
      %v1389 = vadd.f32 0.0, %v1388
      %1390 = vdwg.mxu0
      %1391 = vmatpush.bf16.msra.mxu0 %v1338
      %1392 = vmatpush.bf16.msra.mxu0 %v1336
      %1393 = vmatpush.bf16.msra.mxu0 %v1334
      %1394 = vmatpush.bf16.msra.mxu0 %v1332
      %1395 = vmatpush.bf16.msra.mxu0 %v1330
      %1396 = vmatpush.bf16.msra.mxu0 %v1328
      %1397 = vmatpush.bf16.msra.mxu0 %v1326
      %1398 = vmatpush.bf16.msra.mxu0 %v1324
      %1399 = vmatmul.bf16.gmra.mxu0 %v1176
      %v1400 = vpop.f32.mrf.mxu0
      %v1401 = vadd.f32 %v1382, %v1400
      %v1402 = vpop.f32.mrf.mxu0
      %v1403 = vadd.f32 %v1384, %v1402
      %1404 = vmatmul.bf16.gmra.mxu0 %v1178
      %v1405 = vpop.f32.mrf.mxu0
      %v1406 = vadd.f32 %v1387, %v1405
      %v1407 = vpop.f32.mrf.mxu0
      %v1408 = vadd.f32 %v1389, %v1407
      %1409 = vdwg.mxu0
      %1410 = vmatpush.bf16.msra.mxu0 %v1323
      %1411 = vmatpush.bf16.msra.mxu0 %v1321
      %1412 = vmatpush.bf16.msra.mxu0 %v1319
      %1413 = vmatpush.bf16.msra.mxu0 %v1317
      %1414 = vmatpush.bf16.msra.mxu0 %v1315
      %1415 = vmatpush.bf16.msra.mxu0 %v1313
      %1416 = vmatpush.bf16.msra.mxu0 %v1311
      %1417 = vmatpush.bf16.msra.mxu0 %v1309
      %1418 = vmatmul.bf16.gmra.mxu0 %v1175
      %v1419 = vpop.f32.mrf.mxu0
      %v1420 = vadd.f32 0.0, %v1419
      %v1421 = vpop.f32.mrf.mxu0
      %v1422 = vadd.f32 0.0, %v1421
      %1423 = vmatmul.bf16.gmra.mxu0 %v1177
      %v1424 = vpop.f32.mrf.mxu0
      %v1425 = vadd.f32 0.0, %v1424
      %v1426 = vpop.f32.mrf.mxu0
      %v1427 = vadd.f32 0.0, %v1426
      %1428 = vdwg.mxu0
      %1429 = vmatpush.bf16.msra.mxu0 %v1339
      %1430 = vmatpush.bf16.msra.mxu0 %v1337
      %1431 = vmatpush.bf16.msra.mxu0 %v1335
      %1432 = vmatpush.bf16.msra.mxu0 %v1333
      %1433 = vmatpush.bf16.msra.mxu0 %v1331
      %1434 = vmatpush.bf16.msra.mxu0 %v1329
      %1435 = vmatpush.bf16.msra.mxu0 %v1327
      %1436 = vmatpush.bf16.msra.mxu0 %v1325
      %1437 = vmatmul.bf16.gmra.mxu0 %v1176
      %v1438 = vpop.f32.mrf.mxu0
      %v1439 = vadd.f32 %v1420, %v1438
      %v1440 = vpop.f32.mrf.mxu0
      %v1441 = vadd.f32 %v1422, %v1440
      %1442 = vmatmul.bf16.gmra.mxu0 %v1178
      %v1443 = vpop.f32.mrf.mxu0
      %v1444 = vadd.f32 %v1425, %v1443
      %v1445 = vpop.f32.mrf.mxu0
      %v1446 = vadd.f32 %v1427, %v1445
      %1447 = vdwg.mxu0
      %v1480 = vunpack.c.l.b16 %v1143
      %v1481 = vunpack.c.h.b16 %v1143
      %v1482 = vunpack.c.l.b16 %v1144
      %v1483 = vunpack.c.h.b16 %v1144
      %v1484 = vunpack.c.l.b16 %v1145
      %v1485 = vunpack.c.h.b16 %v1145
      %v1486 = vunpack.c.l.b16 %v1146
      %v1487 = vunpack.c.h.b16 %v1146
      %v1488 = vunpack.c.l.b16 %v1147
      %v1489 = vunpack.c.h.b16 %v1147
      %v1490 = vunpack.c.l.b16 %v1148
      %v1491 = vunpack.c.h.b16 %v1148
      %v1492 = vunpack.c.l.b16 %v1149
      %v1493 = vunpack.c.h.b16 %v1149
      %v1494 = vunpack.c.l.b16 %v1150
      %v1495 = vunpack.c.h.b16 %v1150
      %v1496 = vunpack.c.l.b16 %v1151
      %v1497 = vunpack.c.h.b16 %v1151
      %v1498 = vunpack.c.l.b16 %v1152
      %v1499 = vunpack.c.h.b16 %v1152
      %v1500 = vunpack.c.l.b16 %v1153
      %v1501 = vunpack.c.h.b16 %v1153
      %v1502 = vunpack.c.l.b16 %v1154
      %v1503 = vunpack.c.h.b16 %v1154
      %v1504 = vunpack.c.l.b16 %v1155
      %v1505 = vunpack.c.h.b16 %v1155
      %v1506 = vunpack.c.l.b16 %v1156
      %v1507 = vunpack.c.h.b16 %v1156
      %v1508 = vunpack.c.l.b16 %v1157
      %v1509 = vunpack.c.h.b16 %v1157
      %v1510 = vunpack.c.l.b16 %v1158
      %v1511 = vunpack.c.h.b16 %v1158
      %v1512 = vunpack.c.l.b16 %v1159
      %v1513 = vunpack.c.h.b16 %v1159
      %v1514 = vunpack.c.l.b16 %v1160
      %v1515 = vunpack.c.h.b16 %v1160
      %v1516 = vunpack.c.l.b16 %v1161
      %v1517 = vunpack.c.h.b16 %v1161
      %v1518 = vunpack.c.l.b16 %v1162
      %v1519 = vunpack.c.h.b16 %v1162
      %v1520 = vunpack.c.l.b16 %v1163
      %v1521 = vunpack.c.h.b16 %v1163
      %v1522 = vunpack.c.l.b16 %v1164
      %v1523 = vunpack.c.h.b16 %v1164
      %v1524 = vunpack.c.l.b16 %v1165
      %v1525 = vunpack.c.h.b16 %v1165
      %v1526 = vunpack.c.l.b16 %v1166
      %v1527 = vunpack.c.h.b16 %v1166
      %v1528 = vunpack.c.l.b16 %v1167
      %v1529 = vunpack.c.h.b16 %v1167
      %v1530 = vunpack.c.l.b16 %v1168
      %v1531 = vunpack.c.h.b16 %v1168
      %v1532 = vunpack.c.l.b16 %v1169
      %v1533 = vunpack.c.h.b16 %v1169
      %v1534 = vunpack.c.l.b16 %v1170
      %v1535 = vunpack.c.h.b16 %v1170
      %v1536 = vunpack.c.l.b16 %v1171
      %v1537 = vunpack.c.h.b16 %v1171
      %v1538 = vunpack.c.l.b16 %v1172
      %v1539 = vunpack.c.h.b16 %v1172
      %v1540 = vunpack.c.l.b16 %v1173
      %v1541 = vunpack.c.h.b16 %v1173
      %v1542 = vunpack.c.l.b16 %v1174
      %v1543 = vunpack.c.h.b16 %v1174
      %v1544 = vpack.c.b16 %v1482, %v1480
      %v1545 = vpack.c.b16 %v1483, %v1481
      %v1546 = vpack.c.b16 %v1486, %v1484
      %v1547 = vpack.c.b16 %v1487, %v1485
      %v1548 = vpack.c.b16 %v1490, %v1488
      %v1549 = vpack.c.b16 %v1491, %v1489
      %v1550 = vpack.c.b16 %v1494, %v1492
      %v1551 = vpack.c.b16 %v1495, %v1493
      %v1552 = vpack.c.b16 %v1498, %v1496
      %v1553 = vpack.c.b16 %v1499, %v1497
      %v1554 = vpack.c.b16 %v1502, %v1500
      %v1555 = vpack.c.b16 %v1503, %v1501
      %v1556 = vpack.c.b16 %v1506, %v1504
      %v1557 = vpack.c.b16 %v1507, %v1505
      %v1558 = vpack.c.b16 %v1510, %v1508
      %v1559 = vpack.c.b16 %v1511, %v1509
      %v1560 = vpack.c.b16 %v1514, %v1512
      %v1561 = vpack.c.b16 %v1515, %v1513
      %v1562 = vpack.c.b16 %v1518, %v1516
      %v1563 = vpack.c.b16 %v1519, %v1517
      %v1564 = vpack.c.b16 %v1522, %v1520
      %v1565 = vpack.c.b16 %v1523, %v1521
      %v1566 = vpack.c.b16 %v1526, %v1524
      %v1567 = vpack.c.b16 %v1527, %v1525
      %v1568 = vpack.c.b16 %v1530, %v1528
      %v1569 = vpack.c.b16 %v1531, %v1529
      %v1570 = vpack.c.b16 %v1534, %v1532
      %v1571 = vpack.c.b16 %v1535, %v1533
      %v1572 = vpack.c.b16 %v1538, %v1536
      %v1573 = vpack.c.b16 %v1539, %v1537
      %v1574 = vpack.c.b16 %v1542, %v1540
      %v1575 = vpack.c.b16 %v1543, %v1541
      %1608 = vmatpush.bf16.msra.mxu0 %v1558
      %1609 = vmatpush.bf16.msra.mxu0 %v1556
      %1610 = vmatpush.bf16.msra.mxu0 %v1554
      %1611 = vmatpush.bf16.msra.mxu0 %v1552
      %1612 = vmatpush.bf16.msra.mxu0 %v1550
      %1613 = vmatpush.bf16.msra.mxu0 %v1548
      %1614 = vmatpush.bf16.msra.mxu0 %v1546
      %1615 = vmatpush.bf16.msra.mxu0 %v1544
      %1616 = vmatmul.bf16.gmra.mxu0 %v1139
      %v1617 = vpop.f32.mrf.mxu0
      %v1618 = vadd.f32 %v1401, %v1617
      %v1619 = vpop.f32.mrf.mxu0
      %v1620 = vadd.f32 %v1403, %v1619
      %1621 = vmatmul.bf16.gmra.mxu0 %v1141
      %v1622 = vpop.f32.mrf.mxu0
      %v1623 = vadd.f32 %v1406, %v1622
      %v1624 = vpop.f32.mrf.mxu0
      %v1625 = vadd.f32 %v1408, %v1624
      %1626 = vdwg.mxu0
      %1627 = vmatpush.bf16.msra.mxu0 %v1574
      %1628 = vmatpush.bf16.msra.mxu0 %v1572
      %1629 = vmatpush.bf16.msra.mxu0 %v1570
      %1630 = vmatpush.bf16.msra.mxu0 %v1568
      %1631 = vmatpush.bf16.msra.mxu0 %v1566
      %1632 = vmatpush.bf16.msra.mxu0 %v1564
      %1633 = vmatpush.bf16.msra.mxu0 %v1562
      %1634 = vmatpush.bf16.msra.mxu0 %v1560
      %1635 = vmatmul.bf16.gmra.mxu0 %v1140
      %v1636 = vpop.f32.mrf.mxu0
      %v1637 = vadd.f32 %v1618, %v1636
      %v1638 = vpop.f32.mrf.mxu0
      %v1639 = vadd.f32 %v1620, %v1638
      %1640 = vmatmul.bf16.gmra.mxu0 %v1142
      %v1641 = vpop.f32.mrf.mxu0
      %v1642 = vadd.f32 %v1623, %v1641
      %v1643 = vpop.f32.mrf.mxu0
      %v1644 = vadd.f32 %v1625, %v1643
      %1645 = vdwg.mxu0
      %1646 = vmatpush.bf16.msra.mxu0 %v1559
      %1647 = vmatpush.bf16.msra.mxu0 %v1557
      %1648 = vmatpush.bf16.msra.mxu0 %v1555
      %1649 = vmatpush.bf16.msra.mxu0 %v1553
      %1650 = vmatpush.bf16.msra.mxu0 %v1551
      %1651 = vmatpush.bf16.msra.mxu0 %v1549
      %1652 = vmatpush.bf16.msra.mxu0 %v1547
      %1653 = vmatpush.bf16.msra.mxu0 %v1545
      %1654 = vmatmul.bf16.gmra.mxu0 %v1139
      %v1655 = vpop.f32.mrf.mxu0
      %v1656 = vadd.f32 %v1439, %v1655
      %v1657 = vpop.f32.mrf.mxu0
      %v1658 = vadd.f32 %v1441, %v1657
      %1659 = vmatmul.bf16.gmra.mxu0 %v1141
      %v1660 = vpop.f32.mrf.mxu0
      %v1661 = vadd.f32 %v1444, %v1660
      %v1662 = vpop.f32.mrf.mxu0
      %v1663 = vadd.f32 %v1446, %v1662
      %1664 = vdwg.mxu0
      %1665 = vmatpush.bf16.msra.mxu0 %v1575
      %1666 = vmatpush.bf16.msra.mxu0 %v1573
      %1667 = vmatpush.bf16.msra.mxu0 %v1571
      %1668 = vmatpush.bf16.msra.mxu0 %v1569
      %1669 = vmatpush.bf16.msra.mxu0 %v1567
      %1670 = vmatpush.bf16.msra.mxu0 %v1565
      %1671 = vmatpush.bf16.msra.mxu0 %v1563
      %1672 = vmatpush.bf16.msra.mxu0 %v1561
      %1673 = vmatmul.bf16.gmra.mxu0 %v1140
      %v1674 = vpop.f32.mrf.mxu0
      %v1675 = vadd.f32 %v1656, %v1674
      %v1676 = vpop.f32.mrf.mxu0
      %v1677 = vadd.f32 %v1658, %v1676
      %1678 = vmatmul.bf16.gmra.mxu0 %v1142
      %v1679 = vpop.f32.mrf.mxu0
      %v1680 = vadd.f32 %v1661, %v1679
      %v1681 = vpop.f32.mrf.mxu0
      %v1682 = vadd.f32 %v1663, %v1681
      %1683 = vdwg.mxu0
      %v1684 = vrot.slane %v1115, 1
      %v1685 = vrot.slane %v1116, 1
      %v1686 = vrot.slane %v1117, 1
      %v1687 = vrot.slane %v1118, 1
      %v1688 = vrot.slane %v1119, 1
      %v1689 = vrot.slane %v1120, 1
      %v1690 = vrot.slane %v1121, 1
      %v1691 = vrot.slane %v1122, 1
      %v1692 = vsel %vm923, %v1688, %v1690
      %v1693 = vsel %vm923, %v1689, %v1691
      %v1694 = vsel %vm923, %v1686, %v1688
      %v1695 = vsel %vm923, %v1687, %v1689
      %v1696 = vsel %vm923, %v1684, %v1686
      %v1697 = vsel %vm923, %v1685, %v1687
      %v1698 = vsel %vm923, %v1690, %v1684
      %v1699 = vsel %vm923, %v1691, %v1685
      %v1700 = vpack.c.bf16 %v1694, %v1696
      %v1701 = vpack.c.bf16 %v1695, %v1697
      %v1702 = vpack.c.bf16 %v1698, %v1692
      %v1703 = vpack.c.bf16 %v1699, %v1693
      %s1704 = scalar_lea.vmem %s6, 512
      %v1705 = vld [vmem:[%s1704] sm:$0xff]
      %v1706 = vld [vmem:[%s1704 + $0x8] sm:$0xff]
      %v1707 = vld [vmem:[%s1704 + $0x10] sm:$0xff]
      %v1708 = vld [vmem:[%s1704 + $0x18] sm:$0xff]
      %v1709 = vld [vmem:[%s1704 + $0x20] sm:$0xff]
      %v1710 = vld [vmem:[%s1704 + $0x28] sm:$0xff]
      %v1711 = vld [vmem:[%s1704 + $0x30] sm:$0xff]
      %v1712 = vld [vmem:[%s1704 + $0x38] sm:$0xff]
      %v1713 = vld [vmem:[%s1704 + $0x40] sm:$0xff]
      %v1714 = vld [vmem:[%s1704 + $0x48] sm:$0xff]
      %v1715 = vld [vmem:[%s1704 + $0x50] sm:$0xff]
      %v1716 = vld [vmem:[%s1704 + $0x58] sm:$0xff]
      %v1717 = vld [vmem:[%s1704 + $0x60] sm:$0xff]
      %v1718 = vld [vmem:[%s1704 + $0x68] sm:$0xff]
      %v1719 = vld [vmem:[%s1704 + $0x70] sm:$0xff]
      %v1720 = vld [vmem:[%s1704 + $0x78] sm:$0xff]
      %v1721 = vld [vmem:[%s1704 + $0x80] sm:$0xff]
      %v1722 = vld [vmem:[%s1704 + $0x88] sm:$0xff]
      %v1723 = vld [vmem:[%s1704 + $0x90] sm:$0xff]
      %v1724 = vld [vmem:[%s1704 + $0x98] sm:$0xff]
      %v1725 = vld [vmem:[%s1704 + $0xa0] sm:$0xff]
      %v1726 = vld [vmem:[%s1704 + $0xa8] sm:$0xff]
      %v1727 = vld [vmem:[%s1704 + $0xb0] sm:$0xff]
      %v1728 = vld [vmem:[%s1704 + $0xb8] sm:$0xff]
      %v1729 = vld [vmem:[%s1704 + $0xc0] sm:$0xff]
      %v1730 = vld [vmem:[%s1704 + $0xc8] sm:$0xff]
      %v1731 = vld [vmem:[%s1704 + $0xd0] sm:$0xff]
      %v1732 = vld [vmem:[%s1704 + $0xd8] sm:$0xff]
      %v1733 = vld [vmem:[%s1704 + $0xe0] sm:$0xff]
      %v1734 = vld [vmem:[%s1704 + $0xe8] sm:$0xff]
      %v1735 = vld [vmem:[%s1704 + $0xf0] sm:$0xff]
      %v1736 = vld [vmem:[%s1704 + $0xf8] sm:$0xff]
      %v1769 = vunpack.c.l.b16 %v1705
      %v1770 = vunpack.c.h.b16 %v1705
      %v1771 = vunpack.c.l.b16 %v1706
      %v1772 = vunpack.c.h.b16 %v1706
      %v1773 = vunpack.c.l.b16 %v1707
      %v1774 = vunpack.c.h.b16 %v1707
      %v1775 = vunpack.c.l.b16 %v1708
      %v1776 = vunpack.c.h.b16 %v1708
      %v1777 = vunpack.c.l.b16 %v1709
      %v1778 = vunpack.c.h.b16 %v1709
      %v1779 = vunpack.c.l.b16 %v1710
      %v1780 = vunpack.c.h.b16 %v1710
      %v1781 = vunpack.c.l.b16 %v1711
      %v1782 = vunpack.c.h.b16 %v1711
      %v1783 = vunpack.c.l.b16 %v1712
      %v1784 = vunpack.c.h.b16 %v1712
      %v1785 = vunpack.c.l.b16 %v1713
      %v1786 = vunpack.c.h.b16 %v1713
      %v1787 = vunpack.c.l.b16 %v1714
      %v1788 = vunpack.c.h.b16 %v1714
      %v1789 = vunpack.c.l.b16 %v1715
      %v1790 = vunpack.c.h.b16 %v1715
      %v1791 = vunpack.c.l.b16 %v1716
      %v1792 = vunpack.c.h.b16 %v1716
      %v1793 = vunpack.c.l.b16 %v1717
      %v1794 = vunpack.c.h.b16 %v1717
      %v1795 = vunpack.c.l.b16 %v1718
      %v1796 = vunpack.c.h.b16 %v1718
      %v1797 = vunpack.c.l.b16 %v1719
      %v1798 = vunpack.c.h.b16 %v1719
      %v1799 = vunpack.c.l.b16 %v1720
      %v1800 = vunpack.c.h.b16 %v1720
      %v1801 = vunpack.c.l.b16 %v1721
      %v1802 = vunpack.c.h.b16 %v1721
      %v1803 = vunpack.c.l.b16 %v1722
      %v1804 = vunpack.c.h.b16 %v1722
      %v1805 = vunpack.c.l.b16 %v1723
      %v1806 = vunpack.c.h.b16 %v1723
      %v1807 = vunpack.c.l.b16 %v1724
      %v1808 = vunpack.c.h.b16 %v1724
      %v1809 = vunpack.c.l.b16 %v1725
      %v1810 = vunpack.c.h.b16 %v1725
      %v1811 = vunpack.c.l.b16 %v1726
      %v1812 = vunpack.c.h.b16 %v1726
      %v1813 = vunpack.c.l.b16 %v1727
      %v1814 = vunpack.c.h.b16 %v1727
      %v1815 = vunpack.c.l.b16 %v1728
      %v1816 = vunpack.c.h.b16 %v1728
      %v1817 = vunpack.c.l.b16 %v1729
      %v1818 = vunpack.c.h.b16 %v1729
      %v1819 = vunpack.c.l.b16 %v1730
      %v1820 = vunpack.c.h.b16 %v1730
      %v1821 = vunpack.c.l.b16 %v1731
      %v1822 = vunpack.c.h.b16 %v1731
      %v1823 = vunpack.c.l.b16 %v1732
      %v1824 = vunpack.c.h.b16 %v1732
      %v1825 = vunpack.c.l.b16 %v1733
      %v1826 = vunpack.c.h.b16 %v1733
      %v1827 = vunpack.c.l.b16 %v1734
      %v1828 = vunpack.c.h.b16 %v1734
      %v1829 = vunpack.c.l.b16 %v1735
      %v1830 = vunpack.c.h.b16 %v1735
      %v1831 = vunpack.c.l.b16 %v1736
      %v1832 = vunpack.c.h.b16 %v1736
      %v1833 = vpack.c.b16 %v1771, %v1769
      %v1834 = vpack.c.b16 %v1772, %v1770
      %v1835 = vpack.c.b16 %v1775, %v1773
      %v1836 = vpack.c.b16 %v1776, %v1774
      %v1837 = vpack.c.b16 %v1779, %v1777
      %v1838 = vpack.c.b16 %v1780, %v1778
      %v1839 = vpack.c.b16 %v1783, %v1781
      %v1840 = vpack.c.b16 %v1784, %v1782
      %v1841 = vpack.c.b16 %v1787, %v1785
      %v1842 = vpack.c.b16 %v1788, %v1786
      %v1843 = vpack.c.b16 %v1791, %v1789
      %v1844 = vpack.c.b16 %v1792, %v1790
      %v1845 = vpack.c.b16 %v1795, %v1793
      %v1846 = vpack.c.b16 %v1796, %v1794
      %v1847 = vpack.c.b16 %v1799, %v1797
      %v1848 = vpack.c.b16 %v1800, %v1798
      %v1849 = vpack.c.b16 %v1803, %v1801
      %v1850 = vpack.c.b16 %v1804, %v1802
      %v1851 = vpack.c.b16 %v1807, %v1805
      %v1852 = vpack.c.b16 %v1808, %v1806
      %v1853 = vpack.c.b16 %v1811, %v1809
      %v1854 = vpack.c.b16 %v1812, %v1810
      %v1855 = vpack.c.b16 %v1815, %v1813
      %v1856 = vpack.c.b16 %v1816, %v1814
      %v1857 = vpack.c.b16 %v1819, %v1817
      %v1858 = vpack.c.b16 %v1820, %v1818
      %v1859 = vpack.c.b16 %v1823, %v1821
      %v1860 = vpack.c.b16 %v1824, %v1822
      %v1861 = vpack.c.b16 %v1827, %v1825
      %v1862 = vpack.c.b16 %v1828, %v1826
      %v1863 = vpack.c.b16 %v1831, %v1829
      %v1864 = vpack.c.b16 %v1832, %v1830
      %1897 = vmatpush.bf16.msra.mxu0 %v1847
      %1898 = vmatpush.bf16.msra.mxu0 %v1845
      %1899 = vmatpush.bf16.msra.mxu0 %v1843
      %1900 = vmatpush.bf16.msra.mxu0 %v1841
      %1901 = vmatpush.bf16.msra.mxu0 %v1839
      %1902 = vmatpush.bf16.msra.mxu0 %v1837
      %1903 = vmatpush.bf16.msra.mxu0 %v1835
      %1904 = vmatpush.bf16.msra.mxu0 %v1833
      %1905 = vmatmul.bf16.gmra.mxu0 %v1700
      %v1906 = vpop.f32.mrf.mxu0
      %v1907 = vadd.f32 0.0, %v1906
      %v1908 = vpop.f32.mrf.mxu0
      %v1909 = vadd.f32 0.0, %v1908
      %1910 = vmatmul.bf16.gmra.mxu0 %v1702
      %v1911 = vpop.f32.mrf.mxu0
      %v1912 = vadd.f32 0.0, %v1911
      %v1913 = vpop.f32.mrf.mxu0
      %v1914 = vadd.f32 0.0, %v1913
      %1915 = vdwg.mxu0
      %1916 = vmatpush.bf16.msra.mxu0 %v1863
      %1917 = vmatpush.bf16.msra.mxu0 %v1861
      %1918 = vmatpush.bf16.msra.mxu0 %v1859
      %1919 = vmatpush.bf16.msra.mxu0 %v1857
      %1920 = vmatpush.bf16.msra.mxu0 %v1855
      %1921 = vmatpush.bf16.msra.mxu0 %v1853
      %1922 = vmatpush.bf16.msra.mxu0 %v1851
      %1923 = vmatpush.bf16.msra.mxu0 %v1849
      %1924 = vmatmul.bf16.gmra.mxu0 %v1701
      %v1925 = vpop.f32.mrf.mxu0
      %v1926 = vadd.f32 %v1907, %v1925
      %v1927 = vpop.f32.mrf.mxu0
      %v1928 = vadd.f32 %v1909, %v1927
      %1929 = vmatmul.bf16.gmra.mxu0 %v1703
      %v1930 = vpop.f32.mrf.mxu0
      %v1931 = vadd.f32 %v1912, %v1930
      %v1932 = vpop.f32.mrf.mxu0
      %v1933 = vadd.f32 %v1914, %v1932
      %1934 = vdwg.mxu0
      %1935 = vmatpush.bf16.msra.mxu0 %v1848
      %1936 = vmatpush.bf16.msra.mxu0 %v1846
      %1937 = vmatpush.bf16.msra.mxu0 %v1844
      %1938 = vmatpush.bf16.msra.mxu0 %v1842
      %1939 = vmatpush.bf16.msra.mxu0 %v1840
      %1940 = vmatpush.bf16.msra.mxu0 %v1838
      %1941 = vmatpush.bf16.msra.mxu0 %v1836
      %1942 = vmatpush.bf16.msra.mxu0 %v1834
      %1943 = vmatmul.bf16.gmra.mxu0 %v1700
      %v1944 = vpop.f32.mrf.mxu0
      %v1945 = vadd.f32 0.0, %v1944
      %v1946 = vpop.f32.mrf.mxu0
      %v1947 = vadd.f32 0.0, %v1946
      %1948 = vmatmul.bf16.gmra.mxu0 %v1702
      %v1949 = vpop.f32.mrf.mxu0
      %v1950 = vadd.f32 0.0, %v1949
      %v1951 = vpop.f32.mrf.mxu0
      %v1952 = vadd.f32 0.0, %v1951
      %1953 = vdwg.mxu0
      %1954 = vmatpush.bf16.msra.mxu0 %v1864
      %1955 = vmatpush.bf16.msra.mxu0 %v1862
      %1956 = vmatpush.bf16.msra.mxu0 %v1860
      %1957 = vmatpush.bf16.msra.mxu0 %v1858
      %1958 = vmatpush.bf16.msra.mxu0 %v1856
      %1959 = vmatpush.bf16.msra.mxu0 %v1854
      %1960 = vmatpush.bf16.msra.mxu0 %v1852
      %1961 = vmatpush.bf16.msra.mxu0 %v1850
      %1962 = vmatmul.bf16.gmra.mxu0 %v1701
      %v1963 = vpop.f32.mrf.mxu0
      %v1964 = vadd.f32 %v1945, %v1963
      %v1965 = vpop.f32.mrf.mxu0
      %v1966 = vadd.f32 %v1947, %v1965
      %1967 = vmatmul.bf16.gmra.mxu0 %v1703
      %v1968 = vpop.f32.mrf.mxu0
      %v1969 = vadd.f32 %v1950, %v1968
      %v1970 = vpop.f32.mrf.mxu0
      %v1971 = vadd.f32 %v1952, %v1970
      %1972 = vdwg.mxu0
      %v1973 = vadd.f32 %v1637, %v1926
      %v1974 = vadd.f32 %v1675, %v1964
      %v1975 = vadd.f32 %v1639, %v1928
      %v1976 = vadd.f32 %v1677, %v1966
      %v1977 = vadd.f32 %v1642, %v1931
      %v1978 = vadd.f32 %v1680, %v1969
      %v1979 = vadd.f32 %v1644, %v1933
      %v1980 = vadd.f32 %v1682, %v1971
      %v1981 = vld [vmem:[%s7] sm:$0x3]
      %v1983 = vperm.slane %v1981, 0
      %v1984 = vperm.slane %v1981, 1
      %v1987 = vadd.f32 %v1973, %v1983
      %v1988 = vadd.f32 %v1974, %v1984
      %v1989 = vadd.f32 %v1975, %v1983
      %v1990 = vadd.f32 %v1976, %v1984
      %v1991 = vadd.f32 %v1977, %v1983
      %v1992 = vadd.f32 %v1978, %v1984
      %v1993 = vadd.f32 %v1979, %v1983
      %v1994 = vadd.f32 %v1980, %v1984
      %v1995 = vmax.f32 %v1987, 0.0
      %v1996 = vmax.f32 %v1988, 0.0
      %v1997 = vmax.f32 %v1989, 0.0
      %v1998 = vmax.f32 %v1990, 0.0
      %v1999 = vmax.f32 %v1991, 0.0
      %v2000 = vmax.f32 %v1992, 0.0
      %v2001 = vmax.f32 %v1993, 0.0
      %v2002 = vmax.f32 %v1994, 0.0
      %v2003 = vmul.f32 %v1098, %v1995
      %v2004 = vmul.f32 %v1098, %v1996
      %v2005 = vmul.f32 %v1103, %v1997
      %v2006 = vmul.f32 %v1103, %v1998
      %v2007 = vmul.f32 %v1108, %v1999
      %v2008 = vmul.f32 %v1108, %v2000
      %v2009 = vmul.f32 %v1113, %v2001
      %v2010 = vmul.f32 %v1113, %v2002
      %2011 = vst [vmem:[%s307] sm:$0xff] %v2003
      %2012 = vst [vmem:[%s307 + $0x8] sm:$0xff] %v2004
      %2013 = vst [vmem:[%s307 + $0x10] sm:$0xff] %v2005
      %2014 = vst [vmem:[%s307 + $0x18] sm:$0xff] %v2006
      %2015 = vst [vmem:[%s307 + $0x20] sm:$0xff] %v2007
      %2016 = vst [vmem:[%s307 + $0x28] sm:$0xff] %v2008
      %2017 = vst [vmem:[%s307 + $0x30] sm:$0xff] %v2009
      %2018 = vst [vmem:[%s307 + $0x38] sm:$0xff] %v2010
      %s2019 = smul.u32 4, %s19
      %p2020 = scmp.lt.s32.totalorder %s2019, 7
      %s2021 = scalar_select %p2020, %s2019, 7
      %s2022 = smul.addr %s2021, 2
      %s2023 = smul.addr %s2022, 8
      %s2024 = scalar_lea.vmem %s8, %s2023
      // Predicated region
      $region53: #{up_multi_conv_forward.1} parent=51 // pred_check
        %p2025 = pneg %p210
      $region54: #{up_multi_conv_forward.1} parent=51 // pred_check_branch
        %2027 = sbr.rel (%p2025) target = $region56
      $region55: #{up_multi_conv_forward.1} parent=51 // pred_region
        %s2028 = smul.u32 4, %s19
      $region56: #{up_multi_conv_forward.1} parent=51 // pred_fallthru
        _
    $region52: #{up_multi_conv_forward.1} parent=5 // pred_fallthru
      _
    %p2029 = scmp.le.s32.totalorder 2, %s14
    // Predicated region
    $region57: #{up_multi_conv_forward.1} parent=5 // pred_check
      %p2030 = pneg %p2029
    $region58: #{up_multi_conv_forward.1} parent=5 // pred_check_branch
      %2032 = sbr.rel (%p2030) target = $region60
    $region59: #{up_multi_conv_forward.1} parent=5 // pred_region
      %s2033 = ssub.s32 %s14, 2
      // Predicated region
      $region61: #{up_multi_conv_forward.1} parent=59 // pred_check
        %p2034 = pneg %p216
      $region62: #{up_multi_conv_forward.1} parent=59 // pred_check_branch
        %2036 = sbr.rel (%p2034) target = $region64
      $region63: #{up_multi_conv_forward.1} parent=59 // pred_region
        %s2037 = smul.u32 4, %s20
        %p2038 = scmp.lt.s32.totalorder %s2037, 7
        %s2039 = scalar_select %p2038, %s2037, 7
        %s2040 = smul.addr %s2039, 2
        %s2041 = smul.addr %s2040, 8
        %s2042 = scalar_lea.vmem %s8, %s2041
      $region64: #{up_multi_conv_forward.1} parent=59 // pred_fallthru
        _
    $region60: #{up_multi_conv_forward.1} parent=5 // pred_fallthru
      _
  $region6: #{up_multi_conv_forward.1} parent=0 // loop_footer
    %s18 = sadd.s32 1, %s14
  $region7: #{up_multi_conv_forward.1} parent=0 // loop_footer_branch
    %13 = sbr.rel target = $region3
  $region8: #{up_multi_conv_forward.1} parent=0 // loop_exit
    _

</llo_original>
